<compile_context>
chip_gen: v7x
topology: tpu7x:2x2x1
jax: 0.10.0
libtpu: 0.0.40
codegen_flags: <defaults>
</compile_context>

<pallas_src>
import jax
import jax.numpy as jnp
from jax import lax
from jax.experimental import pallas as pl
from jax.experimental.pallas import tpu as pltpu

# --- model config (consistent with the module's __init__) ---
STATE_DIM = 12
LATENT_DIM = 4
HIDDEN_DIM = 32          # expert_network.output_dim[0]
OUT_DIM = 8              # expert_network.output_dim[1]
NUM_EXPERTS = 4
GATE_HIDDEN = 32         # gate_network.dim = [16, 32] (+ num_experts appended)
LN_EPS = 1e-5
BATCH = 2

# derived sizes
CAT_IN = STATE_DIM + LATENT_DIM        # 16  (input to Linear0)
CAT_HID = HIDDEN_DIM + LATENT_DIM      # 36  (LayerNorm width)
EH = NUM_EXPERTS * HIDDEN_DIM          # 128 (all expert hiddens, packed on lanes)
EL = NUM_EXPERTS * LATENT_DIM          # 16
EO = NUM_EXPERTS * OUT_DIM             # 32
MATS_COLS = EH + GATE_HIDDEN           # 160
MAX_TILE_B = 1024                      # rows per grid step (upper bound)

# packed "mats" slab row layout (all starts multiples of 8; grid-invariant, DMA'd once)
W0S_R0 = 0       # [12,160] Linear0 weights, state rows   (experts | gate)
W0L_R0 = 16      # [ 4,160] Linear0 weights, latent rows  (experts | gate)
W1H_R0 = 24      # [128,32] block-diag Linear1, hidden part (LN gamma folded in)
W1L_R0 = 152     # [ 16,32] block-diag Linear1, latent part (LN gamma folded in)
GW1_R0 = 168     # [ 32, 4] gate Linear1
SSEG_R0 = 200    # [128, 4] const: sum 32-lane chunks
GBH_R0 = 328     # [  4,128] const: bcast scalar -> 32 lanes
GBLO_R0 = 336    # const: g_bl [4,16]@cols 0..16 ; g_bo [4,32]@cols 128..160
TLAT_R0 = 344    # [  4,16] const: tile latent x4
TSUM_R0 = 352    # [ 16, 4] const: sum 4-lane chunks
ROUT_R0 = 368    # [ 32, 8] const: gate-weighted expert sum -> 8 output lanes
MATS_ROWS = 400
VECS_ROWS = 8    # row0: b0_all ; row1: b1_fold | gb1


def _policy_kernel(state_ref, lat_ref, mats_ref, vecs_ref, out_ref):
    f32 = jnp.float32
    state = state_ref[...]                               # [TB, 12]
    lat = lat_ref[...]                                   # [TB, 4]

    vecs = vecs_ref[...]                                 # [8, 160]
    b0 = vecs[0:1, :]                                    # [1, 160] Linear0 bias (experts|gate)
    b1 = vecs[1:2, 0:EO]                                 # [1, 32]  Linear1 bias (+LN beta folded)
    gb1 = vecs[1:2, EH:EH + NUM_EXPERTS]                 # [1, 4]   gate Linear1 bias

    # ---- fused first layer: 4 experts + gate hidden; cat([state,latent]) done as 2 dots ----
    h_all = (jnp.dot(state, mats_ref[W0S_R0:W0S_R0 + STATE_DIM, :], preferred_element_type=f32)
             + jnp.dot(lat, mats_ref[W0L_R0:W0L_R0 + LATENT_DIM, :], preferred_element_type=f32)
             + b0)
    h_all = jnp.maximum(h_all, 0.0)                      # ReLU (experts and gate)
    h = h_all[:, 0:EH]                                   # [TB, 128] expert hiddens (4 x 32 lanes)
    gh = h_all[:, EH:EH + GATE_HIDDEN]                   # [TB, 32]  gate hidden

    # ---- gate: Linear -> softmax over experts ----
    glog = jnp.dot(gh, mats_ref[GW1_R0:GW1_R0 + GATE_HIDDEN, 0:NUM_EXPERTS],
                   preferred_element_type=f32) + gb1     # [TB, 4]
    glog = glog - jnp.max(glog, axis=1, keepdims=True)
    gexp = jnp.exp(glog)
    gate = gexp * pl.reciprocal(jnp.sum(gexp, axis=1, keepdims=True), approx=True)  # [TB, 4]

    # ---- constant 0/1 segment / broadcast matrices (precomputed in the slab) ----
    s_seg = mats_ref[SSEG_R0:SSEG_R0 + EH, 0:NUM_EXPERTS]            # [128, 4]
    g_bh = mats_ref[GBH_R0:GBH_R0 + NUM_EXPERTS, 0:EH]               # [4, 128]
    g_bl = mats_ref[GBLO_R0:GBLO_R0 + NUM_EXPERTS, 0:EL]             # [4, 16]
    g_bo = mats_ref[GBLO_R0:GBLO_R0 + NUM_EXPERTS, EH:EH + EO]       # [4, 32]
    t_lat = mats_ref[TLAT_R0:TLAT_R0 + LATENT_DIM, 0:EL]             # [4, 16]
    t_sum = mats_ref[TSUM_R0:TSUM_R0 + EL, 0:NUM_EXPERTS]            # [16, 4]
    r_out = mats_ref[ROUT_R0:ROUT_R0 + EO, 0:OUT_DIM]                # [32, 8]

    # ---- LayerNorm over cat([h_e, latent]) for all experts at once (segment matmuls) ----
    sum_h = jnp.dot(h, s_seg, preferred_element_type=f32)            # [TB, 4]
    sum_l = jnp.sum(lat, axis=1, keepdims=True)                      # [TB, 1]
    mean = (sum_h + sum_l) * (1.0 / CAT_HID)                         # [TB, 4]
    mean_h = jnp.dot(mean, g_bh, preferred_element_type=f32)         # [TB, 128]
    mean_l = jnp.dot(mean, g_bl, preferred_element_type=f32)         # [TB, 16]
    lat_t = jnp.dot(lat, t_lat, preferred_element_type=f32)          # [TB, 16]
    dh = h - mean_h
    dl = lat_t - mean_l
    var = (jnp.dot(dh * dh, s_seg, preferred_element_type=f32)
           + jnp.dot(dl * dl, t_sum, preferred_element_type=f32)) * (1.0 / CAT_HID)
    inv = lax.rsqrt(var + LN_EPS)                                    # [TB, 4]
    inv_h = jnp.dot(inv, g_bh, preferred_element_type=f32)           # [TB, 128]
    inv_l = jnp.dot(inv, g_bl, preferred_element_type=f32)           # [TB, 16]

    # ---- second layer, all experts in one block-diagonal matmul ----
    # (LayerNorm gamma folded into the weights, beta folded into b1 at pack time)
    y = (jnp.dot(dh * inv_h, mats_ref[W1H_R0:W1H_R0 + EH, 0:EO], preferred_element_type=f32)
         + jnp.dot(dl * inv_l, mats_ref[W1L_R0:W1L_R0 + EL, 0:EO], preferred_element_type=f32)
         + b1)                                                       # [TB, 32]

    # ---- gate-weighted sum over experts; direct 8-wide store ----
    gate_b = jnp.dot(gate, g_bo, preferred_element_type=f32)         # [TB, 32]
    out_ref[...] = jnp.dot(y * gate_b, r_out, preferred_element_type=f32)  # [TB, 8]


def _mask(rows, cols, fn):
    r = jnp.arange(rows, dtype=jnp.int32)[:, None]
    c = jnp.arange(cols, dtype=jnp.int32)[None, :]
    return fn(r, c).astype(jnp.float32)


def pack_params(p):
    """Pack natural ([in,out]-layout) params + constant masks into the two kernel slabs.

    Call ONCE at model init and reuse across forward calls.
    """
    E, H, L, O = NUM_EXPERTS, HIDDEN_DIM, LATENT_DIM, OUT_DIM
    # fused Linear0 weight / bias: experts side by side, gate appended
    w0_all = jnp.concatenate([p["w0"][e] for e in range(E)] + [p["gw0"]], axis=1)  # [16,160]
    b0_all = jnp.concatenate([p["b0"][e] for e in range(E)] + [p["gb0"]])          # [160]

    g_h, g_l = p["ln_g"][:, :H], p["ln_g"][:, H:]
    bt_h, bt_l = p["ln_b"][:, :H], p["ln_b"][:, H:]
    w1_h, w1_l = p["w1"][:, :H, :], p["w1"][:, H:, :]

    # fold LayerNorm gamma into Linear1 weights, beta into its bias
    w1h_fold = w1_h * g_h[:, :, None]                                     # [E,H,O]
    w1l_fold = w1_l * g_l[:, :, None]                                     # [E,L,O]
    b1_fold = (p["b1"] + jnp.einsum("eh,eho->eo", bt_h, w1_h)
                       + jnp.einsum("el,elo->eo", bt_l, w1_l))            # [E,O]

    w1h_blk = jnp.zeros((E * H, E * O), jnp.float32)
    w1l_blk = jnp.zeros((E * L, E * O), jnp.float32)
    for e in range(E):
        w1h_blk = w1h_blk.at[e * H:(e + 1) * H, e * O:(e + 1) * O].set(w1h_fold[e])
        w1l_blk = w1l_blk.at[e * L:(e + 1) * L, e * O:(e + 1) * O].set(w1l_fold[e])

    mats = jnp.zeros((MATS_ROWS, MATS_COLS), jnp.float32)
    mats = mats.at[W0S_R0:W0S_R0 + STATE_DIM, :].set(w0_all[:STATE_DIM])
    mats = mats.at[W0L_R0:W0L_R0 + LATENT_DIM, :].set(w0_all[STATE_DIM:])
    mats = mats.at[W1H_R0:W1H_R0 + E * H, 0:E * O].set(w1h_blk)
    mats = mats.at[W1L_R0:W1L_R0 + E * L, 0:E * O].set(w1l_blk)
    mats = mats.at[GW1_R0:GW1_R0 + GATE_HIDDEN, 0:E].set(p["gw1"])
    # precomputed constant 0/1 segment / broadcast / tiling matrices
    mats = mats.at[SSEG_R0:SSEG_R0 + EH, 0:E].set(_mask(EH, E, lambda r, c: r // H == c))
    mats = mats.at[GBH_R0:GBH_R0 + E, 0:EH].set(_mask(E, EH, lambda r, c: c // H == r))
    mats = mats.at[GBLO_R0:GBLO_R0 + E, 0:EL].set(_mask(E, EL, lambda r, c: c // L == r))
    mats = mats.at[GBLO_R0:GBLO_R0 + E, EH:EH + EO].set(_mask(E, EO, lambda r, c: c // O == r))
    mats = mats.at[TLAT_R0:TLAT_R0 + L, 0:EL].set(_mask(L, EL, lambda r, c: c % L == r))
    mats = mats.at[TSUM_R0:TSUM_R0 + EL, 0:E].set(_mask(EL, E, lambda r, c: r // L == c))
    mats = mats.at[ROUT_R0:ROUT_R0 + EO, 0:OUT_DIM].set(_mask(EO, OUT_DIM, lambda r, c: c == r % O))

    vecs = jnp.zeros((VECS_ROWS, MATS_COLS), jnp.float32)
    vecs = vecs.at[0, :].set(b0_all)
    vecs = vecs.at[1, 0:E * O].set(b1_fold.reshape(-1))
    vecs = vecs.at[1, EH:EH + E].set(p["gb1"])
    return mats, vecs


def _round_up(x, m):
    return (x + m - 1) // m * m


def _choose_tile(batch):
    # Large tiles amortize per-grid-step overhead; >=2 grid steps when possible so the
    # "parallel" batch axis can be sharded across the two v7x TensorCores.
    return int(max(8, min(MAX_TILE_B, _round_up(pl.cdiv(batch, 2), 8))))


def policy_forward(state, latent, mats, vecs):
    """state: [B, STATE_DIM], latent: [B, LATENT_DIM]; mats/vecs from pack_params."""
    B = state.shape[0]
    tile_b = _choose_tile(B)
    n_blocks = pl.cdiv(B, tile_b)
    return pl.pallas_call(
        _policy_kernel,
        out_shape=jax.ShapeDtypeStruct((B, OUT_DIM), jnp.float32),
        grid=(n_blocks,),
        in_specs=[
            pl.BlockSpec((tile_b, STATE_DIM), lambda i: (i, 0)),
            pl.BlockSpec((tile_b, LATENT_DIM), lambda i: (i, 0)),
            pl.BlockSpec((MATS_ROWS, MATS_COLS), lambda i: (0, 0)),   # grid-invariant
            pl.BlockSpec((VECS_ROWS, MATS_COLS), lambda i: (0, 0)),   # grid-invariant
        ],
        out_specs=pl.BlockSpec((tile_b, OUT_DIM), lambda i: (i, 0)),
        compiler_params=pltpu.CompilerParams(dimension_semantics=("parallel",)),
    )(state, latent, mats, vecs)


def init_params(key):
    ks = jax.random.split(key, 10)
    n = lambda k, shape, s=0.1: jax.random.normal(k, shape, jnp.float32) * s
    return {
        "w0":   n(ks[0], (NUM_EXPERTS, CAT_IN, HIDDEN_DIM)),
        "b0":   n(ks[1], (NUM_EXPERTS, HIDDEN_DIM), 0.05),
        "ln_g": 1.0 + n(ks[2], (NUM_EXPERTS, CAT_HID), 0.05),
        "ln_b": n(ks[3], (NUM_EXPERTS, CAT_HID), 0.05),
        "w1":   n(ks[4], (NUM_EXPERTS, CAT_HID, OUT_DIM)),
        "b1":   n(ks[5], (NUM_EXPERTS, OUT_DIM), 0.05),
        "gw0":  n(ks[6], (CAT_IN, GATE_HIDDEN)),
        "gb0":  n(ks[7], (GATE_HIDDEN,), 0.05),
        "gw1":  n(ks[8], (GATE_HIDDEN, NUM_EXPERTS)),
        "gb1":  n(ks[9], (NUM_EXPERTS,), 0.05),
    }


def reference_forward(state, latent, p):
    """Pure-JAX replica of PolicyModel.forward (PyTorch semantics)."""
    x = jnp.concatenate([state, latent], axis=1)
    g = jnp.maximum(x @ p["gw0"] + p["gb0"], 0.0)
    gate = jax.nn.softmax(g @ p["gw1"] + p["gb1"], axis=1)
    outs = []
    for e in range(NUM_EXPERTS):
        h = jnp.maximum(x @ p["w0"][e] + p["b0"][e], 0.0)
        hc = jnp.concatenate([h, latent], axis=1)
        mu = jnp.mean(hc, axis=1, keepdims=True)
        var = jnp.mean((hc - mu) ** 2, axis=1, keepdims=True)
        hn = (hc - mu) / jnp.sqrt(var + LN_EPS) * p["ln_g"][e] + p["ln_b"][e]
        outs.append(hn @ p["w1"][e] + p["b1"][e])
    er = jnp.stack(outs, axis=1)                       # [B, E, OUT_DIM]
    return jnp.sum(er * gate[:, :, None], axis=1)      # [B, OUT_DIM]


if __name__ == "__main__":
    key = jax.random.PRNGKey(0)
    k_state, k_latent, k_params, k_big = jax.random.split(key, 4)
    params = init_params(k_params)
    mats, vecs = pack_params(params)           # packed once, reused across calls

    # small-shape check (B=2), as implied by the module
    state = jax.random.normal(k_state, (BATCH, STATE_DIM), jnp.float32)
    latent = jax.random.normal(k_latent, (BATCH, LATENT_DIM), jnp.float32)
    out = jax.block_until_ready(policy_forward(state, latent, mats, vecs))
    ref = reference_forward(state, latent, params)
    assert out.shape == (BATCH, OUT_DIM)
    # tolerance allows for MXU default-precision / reduction-order differences
    assert jnp.allclose(out, ref, atol=2e-3, rtol=2e-3), (out, ref)

    # multi-block grid + ragged last tile path
    B2 = 530
    ks2, kl2 = jax.random.split(k_big)
    state2 = jax.random.normal(ks2, (B2, STATE_DIM), jnp.float32)
    latent2 = jax.random.normal(kl2, (B2, LATENT_DIM), jnp.float32)
    out2 = jax.block_until_ready(policy_forward(state2, latent2, mats, vecs))
    ref2 = reference_forward(state2, latent2, params)
    assert out2.shape == (B2, OUT_DIM)
    assert jnp.allclose(out2, ref2, atol=5e-3, rtol=5e-3)

    print("KERNEL_OK")
</pallas_src>

<mosaic_0001>
module attributes {stable_mosaic.version = 11 : i64} {
  func.func @_policy_kernel(%arg0: i32, %arg1: memref<8x12xf32, #tpu.memory_space<vmem>>, %arg2: memref<8x4xf32, #tpu.memory_space<vmem>>, %arg3: memref<400x160xf32, #tpu.memory_space<vmem>>, %arg4: memref<8x160xf32, #tpu.memory_space<vmem>>, %arg5: memref<8x8xf32, #tpu.memory_space<vmem>>) attributes {dimension_semantics = [#tpu.dimension_semantics<parallel>], iteration_bounds = array<i64: 1>, scalar_prefetch = 0 : i64, scratch_operands = 0 : i64, tpu.core_type = #tpu.core_type<tc>, window_params = [{transform_indices = @transform_0, window_bounds = array<i64: 8, 12>}, {transform_indices = @transform_1, window_bounds = array<i64: 8, 4>}, {pipeline_mode = #tpu.pipeline_mode<synchronous>, transform_indices = @transform_2, window_bounds = array<i64: 400, 160>}, {pipeline_mode = #tpu.pipeline_mode<synchronous>, transform_indices = @transform_3, window_bounds = array<i64: 8, 160>}, {transform_indices = @transform_4, window_bounds = array<i64: 8, 8>}]} {
    %c0 = arith.constant 0 : index
    %c0_0 = arith.constant 0 : index
    %0 = vector.load %arg1[%c0, %c0_0] : memref<8x12xf32, #tpu.memory_space<vmem>>, vector<8x12xf32>
    %c0_1 = arith.constant 0 : index
    %c0_2 = arith.constant 0 : index
    %1 = vector.load %arg2[%c0_1, %c0_2] : memref<8x4xf32, #tpu.memory_space<vmem>>, vector<8x4xf32>
    %c0_3 = arith.constant 0 : index
    %c0_4 = arith.constant 0 : index
    %2 = vector.load %arg4[%c0_3, %c0_4] : memref<8x160xf32, #tpu.memory_space<vmem>>, vector<8x160xf32>
    %3 = vector.extract_strided_slice %2 {offsets = [0, 0], sizes = [1, 160], strides = [1, 1]} : vector<8x160xf32> to vector<1x160xf32>
    %4 = vector.extract_strided_slice %2 {offsets = [1, 0], sizes = [1, 32], strides = [1, 1]} : vector<8x160xf32> to vector<1x32xf32>
    %5 = vector.extract_strided_slice %2 {offsets = [1, 128], sizes = [1, 4], strides = [1, 1]} : vector<8x160xf32> to vector<1x4xf32>
    %c0_5 = arith.constant 0 : index
    %c0_6 = arith.constant 0 : index
    %6 = vector.load %arg3[%c0_5, %c0_6] : memref<400x160xf32, #tpu.memory_space<vmem>>, vector<12x160xf32>
    %cst = arith.constant dense<0.000000e+00> : vector<8x160xf32>
    %7 = tpu.matmul %0, %6, %cst {dimension_numbers = #tpu.dot_dimension_numbers<[1], [0], [0], [1], [0, 0, 1, 1], [], []>} : vector<8x12xf32>, vector<12x160xf32>, vector<8x160xf32> -> vector<8x160xf32>
    %c16 = arith.constant 16 : index
    %c0_7 = arith.constant 0 : index
    %8 = vector.load %arg3[%c16, %c0_7] : memref<400x160xf32, #tpu.memory_space<vmem>>, vector<4x160xf32>
    %cst_8 = arith.constant dense<0.000000e+00> : vector<8x160xf32>
    %9 = tpu.matmul %1, %8, %cst_8 {dimension_numbers = #tpu.dot_dimension_numbers<[1], [0], [0], [1], [0, 0, 1, 1], [], []>} : vector<8x4xf32>, vector<4x160xf32>, vector<8x160xf32> -> vector<8x160xf32>
    %10 = arith.addf %7, %9 : vector<8x160xf32>
    %11 = vector.broadcast %3 : vector<1x160xf32> to vector<8x160xf32>
    %12 = arith.addf %10, %11 : vector<8x160xf32>
    %cst_9 = arith.constant 0.000000e+00 : f32
    %13 = vector.broadcast %cst_9 : f32 to vector<8x160xf32>
    %14 = arith.maximumf %12, %13 : vector<8x160xf32>
    %15 = vector.extract_strided_slice %14 {offsets = [0, 0], sizes = [8, 128], strides = [1, 1]} : vector<8x160xf32> to vector<8x128xf32>
    %16 = vector.extract_strided_slice %14 {offsets = [0, 128], sizes = [8, 32], strides = [1, 1]} : vector<8x160xf32> to vector<8x32xf32>
    %c168 = arith.constant 168 : index
    %c0_10 = arith.constant 0 : index
    %17 = vector.load %arg3[%c168, %c0_10] : memref<400x160xf32, #tpu.memory_space<vmem>>, vector<32x4xf32>
    %cst_11 = arith.constant dense<0.000000e+00> : vector<8x4xf32>
    %18 = tpu.matmul %16, %17, %cst_11 {dimension_numbers = #tpu.dot_dimension_numbers<[1], [0], [0], [1], [0, 0, 1, 1], [], []>} : vector<8x32xf32>, vector<32x4xf32>, vector<8x4xf32> -> vector<8x4xf32>
    %19 = vector.broadcast %5 : vector<1x4xf32> to vector<8x4xf32>
    %20 = arith.addf %18, %19 : vector<8x4xf32>
    %cst_12 = arith.constant dense<0xFF800000> : vector<8xf32>
    %21 = vector.multi_reduction <maximumf>, %20, %cst_12 [1] : vector<8x4xf32> to vector<8xf32>
    %22 = vector.shape_cast %21 : vector<8xf32> to vector<8x1xf32>
    %23 = vector.broadcast %22 : vector<8x1xf32> to vector<8x4xf32>
    %24 = arith.subf %20, %23 : vector<8x4xf32>
    %25 = math.exp %24 : vector<8x4xf32>
    %cst_13 = arith.constant dense<0.000000e+00> : vector<8xf32>
    %26 = vector.multi_reduction <add>, %25, %cst_13 [1] : vector<8x4xf32> to vector<8xf32>
    %27 = vector.shape_cast %26 : vector<8xf32> to vector<8x1xf32>
    %28 = tpu.reciprocal %27 {approx = true} : vector<8x1xf32> -> vector<8x1xf32>
    %29 = vector.broadcast %28 : vector<8x1xf32> to vector<8x4xf32>
    %30 = arith.mulf %25, %29 : vector<8x4xf32>
    %c200 = arith.constant 200 : index
    %c0_14 = arith.constant 0 : index
    %31 = vector.load %arg3[%c200, %c0_14] : memref<400x160xf32, #tpu.memory_space<vmem>>, vector<128x4xf32>
    %c328 = arith.constant 328 : index
    %c0_15 = arith.constant 0 : index
    %32 = vector.load %arg3[%c328, %c0_15] : memref<400x160xf32, #tpu.memory_space<vmem>>, vector<4x128xf32>
    %c336 = arith.constant 336 : index
    %c0_16 = arith.constant 0 : index
    %33 = vector.load %arg3[%c336, %c0_16] : memref<400x160xf32, #tpu.memory_space<vmem>>, vector<4x16xf32>
    %c336_17 = arith.constant 336 : index
    %c128 = arith.constant 128 : index
    %34 = vector.load %arg3[%c336_17, %c128] : memref<400x160xf32, #tpu.memory_space<vmem>>, vector<4x32xf32>
    %c344 = arith.constant 344 : index
    %c0_18 = arith.constant 0 : index
    %35 = vector.load %arg3[%c344, %c0_18] : memref<400x160xf32, #tpu.memory_space<vmem>>, vector<4x16xf32>
    %c352 = arith.constant 352 : index
    %c0_19 = arith.constant 0 : index
    %36 = vector.load %arg3[%c352, %c0_19] : memref<400x160xf32, #tpu.memory_space<vmem>>, vector<16x4xf32>
    %c368 = arith.constant 368 : index
    %c0_20 = arith.constant 0 : index
    %37 = vector.load %arg3[%c368, %c0_20] : memref<400x160xf32, #tpu.memory_space<vmem>>, vector<32x8xf32>
    %cst_21 = arith.constant dense<0.000000e+00> : vector<8x4xf32>
    %38 = tpu.matmul %15, %31, %cst_21 {dimension_numbers = #tpu.dot_dimension_numbers<[1], [0], [0], [1], [0, 0, 1, 1], [], []>} : vector<8x128xf32>, vector<128x4xf32>, vector<8x4xf32> -> vector<8x4xf32>
    %cst_22 = arith.constant dense<0.000000e+00> : vector<8xf32>
    %39 = vector.multi_reduction <add>, %1, %cst_22 [1] : vector<8x4xf32> to vector<8xf32>
    %40 = vector.shape_cast %39 : vector<8xf32> to vector<8x1xf32>
    %41 = vector.broadcast %40 : vector<8x1xf32> to vector<8x4xf32>
    %42 = arith.addf %38, %41 : vector<8x4xf32>
    %cst_23 = arith.constant 0.027777778 : f32
    %43 = vector.broadcast %cst_23 : f32 to vector<8x4xf32>
    %44 = arith.mulf %42, %43 : vector<8x4xf32>
    %cst_24 = arith.constant dense<0.000000e+00> : vector<8x128xf32>
    %45 = tpu.matmul %44, %32, %cst_24 {dimension_numbers = #tpu.dot_dimension_numbers<[1], [0], [0], [1], [0, 0, 1, 1], [], []>} : vector<8x4xf32>, vector<4x128xf32>, vector<8x128xf32> -> vector<8x128xf32>
    %cst_25 = arith.constant dense<0.000000e+00> : vector<8x16xf32>
    %46 = tpu.matmul %44, %33, %cst_25 {dimension_numbers = #tpu.dot_dimension_numbers<[1], [0], [0], [1], [0, 0, 1, 1], [], []>} : vector<8x4xf32>, vector<4x16xf32>, vector<8x16xf32> -> vector<8x16xf32>
    %cst_26 = arith.constant dense<0.000000e+00> : vector<8x16xf32>
    %47 = tpu.matmul %1, %35, %cst_26 {dimension_numbers = #tpu.dot_dimension_numbers<[1], [0], [0], [1], [0, 0, 1, 1], [], []>} : vector<8x4xf32>, vector<4x16xf32>, vector<8x16xf32> -> vector<8x16xf32>
    %48 = arith.subf %15, %45 : vector<8x128xf32>
    %49 = arith.subf %47, %46 : vector<8x16xf32>
    %50 = arith.mulf %48, %48 : vector<8x128xf32>
    %cst_27 = arith.constant dense<0.000000e+00> : vector<8x4xf32>
    %51 = tpu.matmul %50, %31, %cst_27 {dimension_numbers = #tpu.dot_dimension_numbers<[1], [0], [0], [1], [0, 0, 1, 1], [], []>} : vector<8x128xf32>, vector<128x4xf32>, vector<8x4xf32> -> vector<8x4xf32>
    %52 = arith.mulf %49, %49 : vector<8x16xf32>
    %cst_28 = arith.constant dense<0.000000e+00> : vector<8x4xf32>
    %53 = tpu.matmul %52, %36, %cst_28 {dimension_numbers = #tpu.dot_dimension_numbers<[1], [0], [0], [1], [0, 0, 1, 1], [], []>} : vector<8x16xf32>, vector<16x4xf32>, vector<8x4xf32> -> vector<8x4xf32>
    %54 = arith.addf %51, %53 : vector<8x4xf32>
    %cst_29 = arith.constant 0.027777778 : f32
    %55 = vector.broadcast %cst_29 : f32 to vector<8x4xf32>
    %56 = arith.mulf %54, %55 : vector<8x4xf32>
    %cst_30 = arith.constant 9.99999974E-6 : f32
    %57 = vector.broadcast %cst_30 : f32 to vector<8x4xf32>
    %58 = arith.addf %56, %57 : vector<8x4xf32>
    %59 = math.rsqrt %58 : vector<8x4xf32>
    %cst_31 = arith.constant dense<0.000000e+00> : vector<8x128xf32>
    %60 = tpu.matmul %59, %32, %cst_31 {dimension_numbers = #tpu.dot_dimension_numbers<[1], [0], [0], [1], [0, 0, 1, 1], [], []>} : vector<8x4xf32>, vector<4x128xf32>, vector<8x128xf32> -> vector<8x128xf32>
    %cst_32 = arith.constant dense<0.000000e+00> : vector<8x16xf32>
    %61 = tpu.matmul %59, %33, %cst_32 {dimension_numbers = #tpu.dot_dimension_numbers<[1], [0], [0], [1], [0, 0, 1, 1], [], []>} : vector<8x4xf32>, vector<4x16xf32>, vector<8x16xf32> -> vector<8x16xf32>
    %62 = arith.mulf %48, %60 : vector<8x128xf32>
    %c24 = arith.constant 24 : index
    %c0_33 = arith.constant 0 : index
    %63 = vector.load %arg3[%c24, %c0_33] : memref<400x160xf32, #tpu.memory_space<vmem>>, vector<128x32xf32>
    %cst_34 = arith.constant dense<0.000000e+00> : vector<8x32xf32>
    %64 = tpu.matmul %62, %63, %cst_34 {dimension_numbers = #tpu.dot_dimension_numbers<[1], [0], [0], [1], [0, 0, 1, 1], [], []>} : vector<8x128xf32>, vector<128x32xf32>, vector<8x32xf32> -> vector<8x32xf32>
    %65 = arith.mulf %49, %61 : vector<8x16xf32>
    %c152 = arith.constant 152 : index
    %c0_35 = arith.constant 0 : index
    %66 = vector.load %arg3[%c152, %c0_35] : memref<400x160xf32, #tpu.memory_space<vmem>>, vector<16x32xf32>
    %cst_36 = arith.constant dense<0.000000e+00> : vector<8x32xf32>
    %67 = tpu.matmul %65, %66, %cst_36 {dimension_numbers = #tpu.dot_dimension_numbers<[1], [0], [0], [1], [0, 0, 1, 1], [], []>} : vector<8x16xf32>, vector<16x32xf32>, vector<8x32xf32> -> vector<8x32xf32>
    %68 = arith.addf %64, %67 : vector<8x32xf32>
    %69 = vector.broadcast %4 : vector<1x32xf32> to vector<8x32xf32>
    %70 = arith.addf %68, %69 : vector<8x32xf32>
    %cst_37 = arith.constant dense<0.000000e+00> : vector<8x32xf32>
    %71 = tpu.matmul %30, %34, %cst_37 {dimension_numbers = #tpu.dot_dimension_numbers<[1], [0], [0], [1], [0, 0, 1, 1], [], []>} : vector<8x4xf32>, vector<4x32xf32>, vector<8x32xf32> -> vector<8x32xf32>
    %72 = arith.mulf %70, %71 : vector<8x32xf32>
    %cst_38 = arith.constant dense<0.000000e+00> : vector<8x8xf32>
    %73 = tpu.matmul %72, %37, %cst_38 {dimension_numbers = #tpu.dot_dimension_numbers<[1], [0], [0], [1], [0, 0, 1, 1], [], []>} : vector<8x32xf32>, vector<32x8xf32>, vector<8x8xf32> -> vector<8x8xf32>
    %c0_39 = arith.constant 0 : index
    %c0_40 = arith.constant 0 : index
    %74 = vector.load %arg5[%c0_39, %c0_40] : memref<8x8xf32, #tpu.memory_space<vmem>>, vector<8x8xf32>
    tpu.vector_store %arg5[%c0_39, %c0_40], %73 {strides = array<i32>} : memref<8x8xf32, #tpu.memory_space<vmem>>, vector<8x8xf32>,
    return
  }
  func.func @transform_0(%arg0: i32) -> (i32, i32) {
    %c0_i32 = arith.constant 0 : i32
    %c0_i32_0 = arith.constant 0 : i32
    return %arg0, %c0_i32 : i32, i32
  }
  func.func @transform_1(%arg0: i32) -> (i32, i32) {
    %c0_i32 = arith.constant 0 : i32
    %c0_i32_0 = arith.constant 0 : i32
    return %arg0, %c0_i32 : i32, i32
  }
  func.func @transform_2(%arg0: i32) -> (i32, i32) {
    %c0_i32 = arith.constant 0 : i32
    %c0_i32_0 = arith.constant 0 : i32
    %c0_i32_1 = arith.constant 0 : i32
    return %c0_i32, %c0_i32_0 : i32, i32
  }
  func.func @transform_3(%arg0: i32) -> (i32, i32) {
    %c0_i32 = arith.constant 0 : i32
    %c0_i32_0 = arith.constant 0 : i32
    %c0_i32_1 = arith.constant 0 : i32
    return %c0_i32, %c0_i32_0 : i32, i32
  }
  func.func @transform_4(%arg0: i32) -> (i32, i32) {
    %c0_i32 = arith.constant 0 : i32
    %c0_i32_0 = arith.constant 0 : i32
    return %arg0, %c0_i32 : i32, i32
  }
}

</mosaic_0001>

<llo_original>
// kernel: tpu_custom_call.1
$region0: #{tpu_custom_call.1}
  #allocation0 [shape = 'u32[]', space=smem, size = 0x4, offset = 0x4, fixed_abs, tag = 'smem constant byte address 0x4 - core index']
  #allocation1 [shape = 'u32[144,128]{1,0:T(1,128)}', space=vmem, size = 0x12000, scoped, tag = 'internal scratch']
  %s0 = inlined_call_operand.vmem [shape: f32[2,12], index: 0, kind: input, shape index: {}]
  %s1 = inlined_call_operand.vmem [shape: f32[2,4], index: 1, kind: input, shape index: {}]
  %s2 = inlined_call_operand.vmem [shape: f32[400,160], index: 2, kind: input, shape index: {}]
  %s3 = inlined_call_operand.vmem [shape: f32[8,160], index: 3, kind: input, shape index: {}]
  %s4 = inlined_call_operand.hbm [shape: f32[2,8], index: 4, kind: output, shape index: {}]
  %s5 = sld [smem:[#allocation0]]
  $region26: #{tpu_custom_call.1} parent=0
    _
  %s7 = ssub.s32 1, %s5
  %s8 = scalar_select 0, %s7, %s5
  $region1: #{tpu_custom_call.1} parent=0
    #allocation2 [shape = 'u8[4096]{0}', space=vmem, size = 0x1000, scoped, tag = 'output window, operand 0, single buffered']
    #allocation3 [shape = 's32[1]{0}', space=sflag, size = 0x4, scoped, tag = 'scoped memory for tpu_custom_call.1']
    %9 = vsyncpa [#allocation3], 0
    // Predicated region
    $region2: #{tpu_custom_call.1} parent=1 // pred_check
      _
    $region3: #{tpu_custom_call.1} parent=1 // pred_check_branch
      %11 = sbr.rel (0) target = $region5
    $region4: #{tpu_custom_call.1} parent=1 // pred_region
      _
    $region5: #{tpu_custom_call.1} parent=1 // pred_fallthru
      _
    // Predicated region
    $region6: #{tpu_custom_call.1} parent=1 // pred_check
      _
    $region7: #{tpu_custom_call.1} parent=1 // pred_check_branch
      %13 = sbr.rel (0) target = $region9
    $region8: #{tpu_custom_call.1} parent=1 // pred_region
      _
    $region9: #{tpu_custom_call.1} parent=1 // pred_fallthru
      _
    // Predicated region
    $region10: #{tpu_custom_call.1} parent=1 // pred_check
      _
    $region11: #{tpu_custom_call.1} parent=1 // pred_check_branch
      %15 = sbr.rel (0) target = $region13
    $region12: #{tpu_custom_call.1} parent=1 // pred_region
      _
    $region13: #{tpu_custom_call.1} parent=1 // pred_fallthru
      _
    // Predicated region
    $region14: #{tpu_custom_call.1} parent=1 // pred_check
      _
    $region15: #{tpu_custom_call.1} parent=1 // pred_check_branch
      %17 = sbr.rel (0) target = $region17
    $region16: #{tpu_custom_call.1} parent=1 // pred_region
      _
    $region17: #{tpu_custom_call.1} parent=1 // pred_fallthru
      _
    %v18 = vld [vmem:[%s0] sm:$0xff]
    %v19 = vld [vmem:[%s1] sm:$0xff]
    %v20 = vld [vmem:[%s3] sm:$0xff]
    %v21 = vld [vmem:[%s3 + $0x8] sm:$0xff]
    %v22 = vld [vmem:[%s2] sm:$0xff]
    %v23 = vld [vmem:[%s2 + $0x8] sm:$0xff]
    %v24 = vld [vmem:[%s2 + $0x10] sm:$0xf]
    %v25 = vld [vmem:[%s2 + $0x18] sm:$0xf]
    %v26 = vld [vmem:[%s2 + $0x20] sm:$0xf]
    %v27 = vld [vmem:[%s2 + $0x28] sm:$0xf]
    %vm28 = vcmask 31744
    %v30 = vsel %vm28, %v19, 0
    %vm32 = vcmask 1043456
    %v34 = vsel %vm32, %v26, 0
    %v37 = vsel %vm32, %v27, 0
    %39 = vmatprep.subr.mxu0 %v37
    %40 = vmatpush1.msra.mxu0 %v34
    %41 = vmatprep.subr.mxu0 0.0
    %42 = vmatpush1.msra.mxu0 0.0
    %43 = vmatprep.subr.mxu0 0.0
    %44 = vmatpush1.msra.mxu0 0.0
    %45 = vmatprep.subr.mxu0 0.0
    %46 = vmatpush1.msra.mxu0 0.0
    %47 = vmatprep.subr.mxu0 0.0
    %48 = vmatpush1.msra.mxu0 0.0
    %49 = vmatprep.subr.mxu0 0.0
    %50 = vmatpush1.msra.mxu0 0.0
    %51 = vmatprep.subr.mxu0 0.0
    %52 = vmatpush1.msra.mxu0 0.0
    %53 = vmatprep.subr.mxu0 0.0
    %54 = vmatpush1.msra.mxu0 0.0
    %55 = vmatprep.subr.mxu0 0.0
    %56 = vmatpush1.msra.mxu0 0.0
    %57 = vmatprep.subr.mxu0 0.0
    %58 = vmatpush1.msra.mxu0 0.0
    %59 = vmatprep.subr.mxu0 0.0
    %60 = vmatpush1.msra.mxu0 0.0
    %61 = vmatprep.subr.mxu0 0.0
    %62 = vmatpush1.msra.mxu0 0.0
    %63 = vmatprep.subr.mxu0 0.0
    %64 = vmatpush1.msra.mxu0 0.0
    %65 = vmatprep.subr.mxu0 0.0
    %66 = vmatpush1.msra.mxu0 0.0
    %67 = vmatprep.subr.mxu0 0.0
    %68 = vmatpush1.msra.mxu0 0.0
    %69 = vmatprep.subr.mxu0 0.0
    %70 = vmatpush1.msra.mxu0 0.0
    %71 = vmatprep.subr.mxu0 0.0
    %72 = vmatpush1.msra.mxu0 0.0
    %73 = vmatprep.subr.mxu0 0.0
    %74 = vmatpush1.msra.mxu0 0.0
    %75 = vmatprep.subr.mxu0 0.0
    %76 = vmatpush1.msra.mxu0 0.0
    %77 = vmatprep.subr.mxu0 0.0
    %78 = vmatpush1.msra.mxu0 0.0
    %79 = vmatprep.subr.mxu0 0.0
    %80 = vmatpush1.msra.mxu0 0.0
    %81 = vmatprep.subr.mxu0 0.0
    %82 = vmatpush1.msra.mxu0 0.0
    %83 = vmatprep.subr.mxu0 0.0
    %84 = vmatpush1.msra.mxu0 0.0
    %85 = vmatprep.subr.mxu0 0.0
    %86 = vmatpush1.msra.mxu0 0.0
    %87 = vmatprep.subr.mxu0 0.0
    %88 = vmatpush1.msra.mxu0 0.0
    %89 = vmatprep.subr.mxu0 0.0
    %90 = vmatpush1.msra.mxu0 0.0
    %91 = vmatprep.subr.mxu0 0.0
    %92 = vmatpush1.msra.mxu0 0.0
    %93 = vmatprep.subr.mxu0 0.0
    %94 = vmatpush1.msra.mxu0 0.0
    %95 = vmatprep.subr.mxu0 0.0
    %96 = vmatpush1.msra.mxu0 0.0
    %97 = vmatprep.subr.mxu0 0.0
    %98 = vmatpush1.msra.mxu0 0.0
    %99 = vmatprep.subr.mxu0 0.0
    %100 = vmatpush1.msra.mxu0 0.0
    %101 = vmatprep.subr.mxu0 0.0
    %102 = vmatpush1.msra.mxu0 0.0
    %103 = vmatprep.mubr.f32.mxu0 0.0
    %104 = vmatmul.mubr.f32.gmra.mrb[0].mxu0 %v30
    %v105 = vpop.f32.mrb[0].mxu0
    %v106 = vadd.f32 0.0, %v105
    %v107 = vpop.f32.mrb[0].mxu0
    %v108 = vadd.f32 0.0, %v107
    %109 = vdwg.mxu0
    %vm110 = vcmask 97280
    %v112 = vsel %vm110, %v18, 0
    %v115 = vsel %vm32, %v24, 0
    %v118 = vsel %vm32, %v25, 0
    %120 = vmatprep.subr.mxu0 %v23
    %121 = vmatpush1.msra.mxu0 %v22
    %122 = vmatprep.subr.mxu0 %v118
    %123 = vmatpush1.msra.mxu0 %v115
    %124 = vmatprep.subr.mxu0 0.0
    %125 = vmatpush1.msra.mxu0 0.0
    %126 = vmatprep.subr.mxu0 0.0
    %127 = vmatpush1.msra.mxu0 0.0
    %128 = vmatprep.subr.mxu0 0.0
    %129 = vmatpush1.msra.mxu0 0.0
    %130 = vmatprep.subr.mxu0 0.0
    %131 = vmatpush1.msra.mxu0 0.0
    %132 = vmatprep.subr.mxu0 0.0
    %133 = vmatpush1.msra.mxu0 0.0
    %134 = vmatprep.subr.mxu0 0.0
    %135 = vmatpush1.msra.mxu0 0.0
    %136 = vmatprep.subr.mxu0 0.0
    %137 = vmatpush1.msra.mxu0 0.0
    %138 = vmatprep.subr.mxu0 0.0
    %139 = vmatpush1.msra.mxu0 0.0
    %140 = vmatprep.subr.mxu0 0.0
    %141 = vmatpush1.msra.mxu0 0.0
    %142 = vmatprep.subr.mxu0 0.0
    %143 = vmatpush1.msra.mxu0 0.0
    %144 = vmatprep.subr.mxu0 0.0
    %145 = vmatpush1.msra.mxu0 0.0
    %146 = vmatprep.subr.mxu0 0.0
    %147 = vmatpush1.msra.mxu0 0.0
    %148 = vmatprep.subr.mxu0 0.0
    %149 = vmatpush1.msra.mxu0 0.0
    %150 = vmatprep.subr.mxu0 0.0
    %151 = vmatpush1.msra.mxu0 0.0
    %152 = vmatprep.subr.mxu0 0.0
    %153 = vmatpush1.msra.mxu0 0.0
    %154 = vmatprep.subr.mxu0 0.0
    %155 = vmatpush1.msra.mxu0 0.0
    %156 = vmatprep.subr.mxu0 0.0
    %157 = vmatpush1.msra.mxu0 0.0
    %158 = vmatprep.subr.mxu0 0.0
    %159 = vmatpush1.msra.mxu0 0.0
    %160 = vmatprep.subr.mxu0 0.0
    %161 = vmatpush1.msra.mxu0 0.0
    %162 = vmatprep.subr.mxu0 0.0
    %163 = vmatpush1.msra.mxu0 0.0
    %164 = vmatprep.subr.mxu0 0.0
    %165 = vmatpush1.msra.mxu0 0.0
    %166 = vmatprep.subr.mxu0 0.0
    %167 = vmatpush1.msra.mxu0 0.0
    %168 = vmatprep.subr.mxu0 0.0
    %169 = vmatpush1.msra.mxu0 0.0
    %170 = vmatprep.subr.mxu0 0.0
    %171 = vmatpush1.msra.mxu0 0.0
    %172 = vmatprep.subr.mxu0 0.0
    %173 = vmatpush1.msra.mxu0 0.0
    %174 = vmatprep.subr.mxu0 0.0
    %175 = vmatpush1.msra.mxu0 0.0
    %176 = vmatprep.subr.mxu0 0.0
    %177 = vmatpush1.msra.mxu0 0.0
    %178 = vmatprep.subr.mxu0 0.0
    %179 = vmatpush1.msra.mxu0 0.0
    %180 = vmatprep.subr.mxu0 0.0
    %181 = vmatpush1.msra.mxu0 0.0
    %182 = vmatprep.subr.mxu0 0.0
    %183 = vmatpush1.msra.mxu0 0.0
    %184 = vmatprep.mubr.f32.mxu0 0.0
    %185 = vmatmul.mubr.f32.gmra.mrb[0].mxu0 %v112
    %v186 = vpop.f32.mrb[0].mxu0
    %v187 = vadd.f32 %v106, %v186
    %v188 = vpop.f32.mrb[0].mxu0
    %v189 = vadd.f32 %v108, %v188
    %190 = vdwg.mxu0
    %v191 = vlaneseq
    %v192 = vshrl.u32 %v191, 7
    %v193 = vsub.s32 0, %v192
    %v194 = vrot.slane %v20, %v193
    %v195 = vlaneseq
    %v196 = vshrl.u32 %v195, 7
    %v197 = vsub.s32 0, %v196
    %v198 = vrot.slane %v21, %v197
    %v199 = vadd.f32 %v187, %v194
    %v200 = vadd.f32 %v189, %v198
    %v201 = vmax.f32 %v199, 0.0
    %v202 = vmax.f32 %v200, 0.0
    %v203 = vld [vmem:[%s2 + $0x150] sm:$0xff]
    %v204 = vld [vmem:[%s2 + $0x160] sm:$0xff]
    %v205 = vld [vmem:[%s2 + $0x170] sm:$0xff]
    %v206 = vld [vmem:[%s2 + $0x180] sm:$0xff]
    %v207 = vlaneseq
    %v208 = vshrl.u32 %v207, 7
    %v209 = vsub.s32 1, %v208
    %v210 = vrot.slane %v21, %v209
    %vm211 = vcmask 261120
    %v213 = vsel %vm211, %v202, 0
    %215 = vmatprep.subr.mxu0 0.0
    %216 = vmatpush1.msra.mxu0 %v203
    %217 = vmatprep.subr.mxu0 0.0
    %218 = vmatpush1.msra.mxu0 %v204
    %219 = vmatprep.subr.mxu0 0.0
    %220 = vmatpush1.msra.mxu0 %v205
    %221 = vmatprep.subr.mxu0 0.0
    %222 = vmatpush1.msra.mxu0 %v206
    %223 = vmatprep.subr.mxu0 0.0
    %224 = vmatpush1.msra.mxu0 0.0
    %225 = vmatprep.subr.mxu0 0.0
    %226 = vmatpush1.msra.mxu0 0.0
    %227 = vmatprep.subr.mxu0 0.0
    %228 = vmatpush1.msra.mxu0 0.0
    %229 = vmatprep.subr.mxu0 0.0
    %230 = vmatpush1.msra.mxu0 0.0
    %231 = vmatprep.subr.mxu0 0.0
    %232 = vmatpush1.msra.mxu0 0.0
    %233 = vmatprep.subr.mxu0 0.0
    %234 = vmatpush1.msra.mxu0 0.0
    %235 = vmatprep.subr.mxu0 0.0
    %236 = vmatpush1.msra.mxu0 0.0
    %237 = vmatprep.subr.mxu0 0.0
    %238 = vmatpush1.msra.mxu0 0.0
    %239 = vmatprep.subr.mxu0 0.0
    %240 = vmatpush1.msra.mxu0 0.0
    %241 = vmatprep.subr.mxu0 0.0
    %242 = vmatpush1.msra.mxu0 0.0
    %243 = vmatprep.subr.mxu0 0.0
    %244 = vmatpush1.msra.mxu0 0.0
    %245 = vmatprep.subr.mxu0 0.0
    %246 = vmatpush1.msra.mxu0 0.0
    %247 = vmatprep.subr.mxu0 0.0
    %248 = vmatpush1.msra.mxu0 0.0
    %249 = vmatprep.subr.mxu0 0.0
    %250 = vmatpush1.msra.mxu0 0.0
    %251 = vmatprep.subr.mxu0 0.0
    %252 = vmatpush1.msra.mxu0 0.0
    %253 = vmatprep.subr.mxu0 0.0
    %254 = vmatpush1.msra.mxu0 0.0
    %255 = vmatprep.subr.mxu0 0.0
    %256 = vmatpush1.msra.mxu0 0.0
    %257 = vmatprep.subr.mxu0 0.0
    %258 = vmatpush1.msra.mxu0 0.0
    %259 = vmatprep.subr.mxu0 0.0
    %260 = vmatpush1.msra.mxu0 0.0
    %261 = vmatprep.subr.mxu0 0.0
    %262 = vmatpush1.msra.mxu0 0.0
    %263 = vmatprep.subr.mxu0 0.0
    %264 = vmatpush1.msra.mxu0 0.0
    %265 = vmatprep.subr.mxu0 0.0
    %266 = vmatpush1.msra.mxu0 0.0
    %267 = vmatprep.subr.mxu0 0.0
    %268 = vmatpush1.msra.mxu0 0.0
    %269 = vmatprep.subr.mxu0 0.0
    %270 = vmatpush1.msra.mxu0 0.0
    %271 = vmatprep.subr.mxu0 0.0
    %272 = vmatpush1.msra.mxu0 0.0
    %273 = vmatprep.subr.mxu0 0.0
    %274 = vmatpush1.msra.mxu0 0.0
    %275 = vmatprep.subr.mxu0 0.0
    %276 = vmatpush1.msra.mxu0 0.0
    %277 = vmatprep.subr.mxu0 0.0
    %278 = vmatpush1.msra.mxu0 0.0
    %279 = vmatprep.mubr.f32.mxu0 0.0
    %280 = vmatmul.mubr.f32.gmra.mrb[0].mxu0 %v213
    %v281 = vpop.f32.mrb[0].mxu0
    %v282 = vadd.f32 %v210, %v281
    %v283 = vpop.f32.mrb[0].mxu0
    %284 = vdwg.mxu0
    %v285 = vsel %vm28, %v282, -inf
    %286 = vmax.xlane.f32.xlu0 %v285
    %v287 = vpop.xlane.xlu0 %286
    %v288 = vsub.f32 %v282, %v287
    %v289 = vmul.f32 %v288, 1.442695
    %v290 = vpow.pop %v289
    %v291 = vsel %vm28, %v290, 0.0
    %292 = vadd.xlane.f32.xlu0 %v291
    %v293 = vpop.xlane.xlu0 %292
    %v294 = vrcp.pop %v293
    %v295 = vmul.f32 %v290, %v294
    %v296 = vld [vmem:[%s2 + $0x190] sm:$0xff]
    %v297 = vld [vmem:[%s2 + $0x1a0] sm:$0xff]
    %v298 = vld [vmem:[%s2 + $0x1b0] sm:$0xff]
    %v299 = vld [vmem:[%s2 + $0x1c0] sm:$0xff]
    %v300 = vld [vmem:[%s2 + $0x1d0] sm:$0xff]
    %v301 = vld [vmem:[%s2 + $0x1e0] sm:$0xff]
    %v302 = vld [vmem:[%s2 + $0x1f0] sm:$0xff]
    %v303 = vld [vmem:[%s2 + $0x200] sm:$0xff]
    %v304 = vld [vmem:[%s2 + $0x210] sm:$0xff]
    %v305 = vld [vmem:[%s2 + $0x220] sm:$0xff]
    %v306 = vld [vmem:[%s2 + $0x230] sm:$0xff]
    %v307 = vld [vmem:[%s2 + $0x240] sm:$0xff]
    %v308 = vld [vmem:[%s2 + $0x250] sm:$0xff]
    %v309 = vld [vmem:[%s2 + $0x260] sm:$0xff]
    %v310 = vld [vmem:[%s2 + $0x270] sm:$0xff]
    %v311 = vld [vmem:[%s2 + $0x280] sm:$0xff]
    %v312 = vld [vmem:[%s2 + $0x290] sm:$0xf]
    %v313 = vld [vmem:[%s2 + $0x2a0] sm:$0xf]
    %v314 = vld [vmem:[%s2 + $0x2a8] sm:$0xf]
    %v315 = vld [vmem:[%s2 + $0x2b0] sm:$0xf]
    %v316 = vld [vmem:[%s2 + $0x2c0] sm:$0xff]
    %v317 = vld [vmem:[%s2 + $0x2d0] sm:$0xff]
    %v318 = vld [vmem:[%s2 + $0x2e0] sm:$0xff]
    %v319 = vld [vmem:[%s2 + $0x2f0] sm:$0xff]
    %v320 = vld [vmem:[%s2 + $0x300] sm:$0xff]
    %v321 = vld [vmem:[%s2 + $0x310] sm:$0xff]
    %v322 = vsel %vm28, %v19, 0.0
    %323 = vadd.xlane.f32.xlu0 %v322
    %v324 = vpop.xlane.xlu0 %323
    %325 = vmatprep.subr.mxu0 0.0
    %326 = vmatpush1.msra.mxu0 %v296
    %327 = vmatprep.subr.mxu0 0.0
    %328 = vmatpush1.msra.mxu0 %v297
    %329 = vmatprep.subr.mxu0 0.0
    %330 = vmatpush1.msra.mxu0 %v298
    %331 = vmatprep.subr.mxu0 0.0
    %332 = vmatpush1.msra.mxu0 %v299
    %333 = vmatprep.subr.mxu0 0.0
    %334 = vmatpush1.msra.mxu0 %v300
    %335 = vmatprep.subr.mxu0 0.0
    %336 = vmatpush1.msra.mxu0 %v301
    %337 = vmatprep.subr.mxu0 0.0
    %338 = vmatpush1.msra.mxu0 %v302
    %339 = vmatprep.subr.mxu0 0.0
    %340 = vmatpush1.msra.mxu0 %v303
    %341 = vmatprep.subr.mxu0 0.0
    %342 = vmatpush1.msra.mxu0 %v304
    %343 = vmatprep.subr.mxu0 0.0
    %344 = vmatpush1.msra.mxu0 %v305
    %345 = vmatprep.subr.mxu0 0.0
    %346 = vmatpush1.msra.mxu0 %v306
    %347 = vmatprep.subr.mxu0 0.0
    %348 = vmatpush1.msra.mxu0 %v307
    %349 = vmatprep.subr.mxu0 0.0
    %350 = vmatpush1.msra.mxu0 %v308
    %351 = vmatprep.subr.mxu0 0.0
    %352 = vmatpush1.msra.mxu0 %v309
    %353 = vmatprep.subr.mxu0 0.0
    %354 = vmatpush1.msra.mxu0 %v310
    %355 = vmatprep.subr.mxu0 0.0
    %356 = vmatpush1.msra.mxu0 %v311
    %357 = vmatprep.subr.mxu0 0.0
    %358 = vmatpush1.msra.mxu0 0.0
    %359 = vmatprep.subr.mxu0 0.0
    %360 = vmatpush1.msra.mxu0 0.0
    %361 = vmatprep.subr.mxu0 0.0
    %362 = vmatpush1.msra.mxu0 0.0
    %363 = vmatprep.subr.mxu0 0.0
    %364 = vmatpush1.msra.mxu0 0.0
    %365 = vmatprep.subr.mxu0 0.0
    %366 = vmatpush1.msra.mxu0 0.0
    %367 = vmatprep.subr.mxu0 0.0
    %368 = vmatpush1.msra.mxu0 0.0
    %369 = vmatprep.subr.mxu0 0.0
    %370 = vmatpush1.msra.mxu0 0.0
    %371 = vmatprep.subr.mxu0 0.0
    %372 = vmatpush1.msra.mxu0 0.0
    %373 = vmatprep.subr.mxu0 0.0
    %374 = vmatpush1.msra.mxu0 0.0
    %375 = vmatprep.subr.mxu0 0.0
    %376 = vmatpush1.msra.mxu0 0.0
    %377 = vmatprep.subr.mxu0 0.0
    %378 = vmatpush1.msra.mxu0 0.0
    %379 = vmatprep.subr.mxu0 0.0
    %380 = vmatpush1.msra.mxu0 0.0
    %381 = vmatprep.subr.mxu0 0.0
    %382 = vmatpush1.msra.mxu0 0.0
    %383 = vmatprep.subr.mxu0 0.0
    %384 = vmatpush1.msra.mxu0 0.0
    %385 = vmatprep.subr.mxu0 0.0
    %386 = vmatpush1.msra.mxu0 0.0
    %387 = vmatprep.subr.mxu0 0.0
    %388 = vmatpush1.msra.mxu0 0.0
    %389 = vmatprep.mubr.f32.mxu0 0.0
    %390 = vmatmul.mubr.f32.gmra.mrb[0].mxu0 %v201
    %v391 = vpop.f32.mrb[0].mxu0
    %v392 = vadd.f32 %v324, %v391
    %v393 = vpop.f32.mrb[0].mxu0
    %394 = vdwg.mxu0
    %v395 = vmul.f32 %v392, 0.027777778
    %v397 = vsel %vm28, %v395, 0
    %v400 = vsel %vm32, %v312, 0
    %402 = vmatprep.subr.mxu0 0.0
    %403 = vmatpush1.msra.mxu0 %v400
    %404 = vmatprep.subr.mxu0 0.0
    %405 = vmatpush1.msra.mxu0 0.0
    %406 = vmatprep.subr.mxu0 0.0
    %407 = vmatpush1.msra.mxu0 0.0
    %408 = vmatprep.subr.mxu0 0.0
    %409 = vmatpush1.msra.mxu0 0.0
    %410 = vmatprep.subr.mxu0 0.0
    %411 = vmatpush1.msra.mxu0 0.0
    %412 = vmatprep.subr.mxu0 0.0
    %413 = vmatpush1.msra.mxu0 0.0
    %414 = vmatprep.subr.mxu0 0.0
    %415 = vmatpush1.msra.mxu0 0.0
    %416 = vmatprep.subr.mxu0 0.0
    %417 = vmatpush1.msra.mxu0 0.0
    %418 = vmatprep.subr.mxu0 0.0
    %419 = vmatpush1.msra.mxu0 0.0
    %420 = vmatprep.subr.mxu0 0.0
    %421 = vmatpush1.msra.mxu0 0.0
    %422 = vmatprep.subr.mxu0 0.0
    %423 = vmatpush1.msra.mxu0 0.0
    %424 = vmatprep.subr.mxu0 0.0
    %425 = vmatpush1.msra.mxu0 0.0
    %426 = vmatprep.subr.mxu0 0.0
    %427 = vmatpush1.msra.mxu0 0.0
    %428 = vmatprep.subr.mxu0 0.0
    %429 = vmatpush1.msra.mxu0 0.0
    %430 = vmatprep.subr.mxu0 0.0
    %431 = vmatpush1.msra.mxu0 0.0
    %432 = vmatprep.subr.mxu0 0.0
    %433 = vmatpush1.msra.mxu0 0.0
    %434 = vmatprep.subr.mxu0 0.0
    %435 = vmatpush1.msra.mxu0 0.0
    %436 = vmatprep.subr.mxu0 0.0
    %437 = vmatpush1.msra.mxu0 0.0
    %438 = vmatprep.subr.mxu0 0.0
    %439 = vmatpush1.msra.mxu0 0.0
    %440 = vmatprep.subr.mxu0 0.0
    %441 = vmatpush1.msra.mxu0 0.0
    %442 = vmatprep.subr.mxu0 0.0
    %443 = vmatpush1.msra.mxu0 0.0
    %444 = vmatprep.subr.mxu0 0.0
    %445 = vmatpush1.msra.mxu0 0.0
    %446 = vmatprep.subr.mxu0 0.0
    %447 = vmatpush1.msra.mxu0 0.0
    %448 = vmatprep.subr.mxu0 0.0
    %449 = vmatpush1.msra.mxu0 0.0
    %450 = vmatprep.subr.mxu0 0.0
    %451 = vmatpush1.msra.mxu0 0.0
    %452 = vmatprep.subr.mxu0 0.0
    %453 = vmatpush1.msra.mxu0 0.0
    %454 = vmatprep.subr.mxu0 0.0
    %455 = vmatpush1.msra.mxu0 0.0
    %456 = vmatprep.subr.mxu0 0.0
    %457 = vmatpush1.msra.mxu0 0.0
    %458 = vmatprep.subr.mxu0 0.0
    %459 = vmatpush1.msra.mxu0 0.0
    %460 = vmatprep.subr.mxu0 0.0
    %461 = vmatpush1.msra.mxu0 0.0
    %462 = vmatprep.subr.mxu0 0.0
    %463 = vmatpush1.msra.mxu0 0.0
    %464 = vmatprep.subr.mxu0 0.0
    %465 = vmatpush1.msra.mxu0 0.0
    %466 = vmatprep.mubr.f32.mxu0 0.0
    %467 = vmatmul.mubr.f32.gmra.mrb[0].mxu0 %v397
    %v468 = vpop.f32.mrb[0].mxu0
    %v469 = vadd.f32 0.0, %v468
    %v470 = vpop.f32.mrb[0].mxu0
    %471 = vdwg.mxu0
    %v473 = vsel %vm32, %v313, 0
    %475 = vmatprep.subr.mxu0 0.0
    %476 = vmatpush1.msra.mxu0 %v473
    %477 = vmatprep.subr.mxu0 0.0
    %478 = vmatpush1.msra.mxu0 0.0
    %479 = vmatprep.subr.mxu0 0.0
    %480 = vmatpush1.msra.mxu0 0.0
    %481 = vmatprep.subr.mxu0 0.0
    %482 = vmatpush1.msra.mxu0 0.0
    %483 = vmatprep.subr.mxu0 0.0
    %484 = vmatpush1.msra.mxu0 0.0
    %485 = vmatprep.subr.mxu0 0.0
    %486 = vmatpush1.msra.mxu0 0.0
    %487 = vmatprep.subr.mxu0 0.0
    %488 = vmatpush1.msra.mxu0 0.0
    %489 = vmatprep.subr.mxu0 0.0
    %490 = vmatpush1.msra.mxu0 0.0
    %491 = vmatprep.subr.mxu0 0.0
    %492 = vmatpush1.msra.mxu0 0.0
    %493 = vmatprep.subr.mxu0 0.0
    %494 = vmatpush1.msra.mxu0 0.0
    %495 = vmatprep.subr.mxu0 0.0
    %496 = vmatpush1.msra.mxu0 0.0
    %497 = vmatprep.subr.mxu0 0.0
    %498 = vmatpush1.msra.mxu0 0.0
    %499 = vmatprep.subr.mxu0 0.0
    %500 = vmatpush1.msra.mxu0 0.0
    %501 = vmatprep.subr.mxu0 0.0
    %502 = vmatpush1.msra.mxu0 0.0
    %503 = vmatprep.subr.mxu0 0.0
    %504 = vmatpush1.msra.mxu0 0.0
    %505 = vmatprep.subr.mxu0 0.0
    %506 = vmatpush1.msra.mxu0 0.0
    %507 = vmatprep.subr.mxu0 0.0
    %508 = vmatpush1.msra.mxu0 0.0
    %509 = vmatprep.subr.mxu0 0.0
    %510 = vmatpush1.msra.mxu0 0.0
    %511 = vmatprep.subr.mxu0 0.0
    %512 = vmatpush1.msra.mxu0 0.0
    %513 = vmatprep.subr.mxu0 0.0
    %514 = vmatpush1.msra.mxu0 0.0
    %515 = vmatprep.subr.mxu0 0.0
    %516 = vmatpush1.msra.mxu0 0.0
    %517 = vmatprep.subr.mxu0 0.0
    %518 = vmatpush1.msra.mxu0 0.0
    %519 = vmatprep.subr.mxu0 0.0
    %520 = vmatpush1.msra.mxu0 0.0
    %521 = vmatprep.subr.mxu0 0.0
    %522 = vmatpush1.msra.mxu0 0.0
    %523 = vmatprep.subr.mxu0 0.0
    %524 = vmatpush1.msra.mxu0 0.0
    %525 = vmatprep.subr.mxu0 0.0
    %526 = vmatpush1.msra.mxu0 0.0
    %527 = vmatprep.subr.mxu0 0.0
    %528 = vmatpush1.msra.mxu0 0.0
    %529 = vmatprep.subr.mxu0 0.0
    %530 = vmatpush1.msra.mxu0 0.0
    %531 = vmatprep.subr.mxu0 0.0
    %532 = vmatpush1.msra.mxu0 0.0
    %533 = vmatprep.subr.mxu0 0.0
    %534 = vmatpush1.msra.mxu0 0.0
    %535 = vmatprep.subr.mxu0 0.0
    %536 = vmatpush1.msra.mxu0 0.0
    %537 = vmatprep.subr.mxu0 0.0
    %538 = vmatpush1.msra.mxu0 0.0
    %539 = vmatprep.mubr.f32.mxu0 0.0
    %540 = vmatmul.mubr.f32.gmra.mrb[0].mxu0 %v397
    %v541 = vpop.f32.mrb[0].mxu0
    %v542 = vadd.f32 0.0, %v541
    %v543 = vpop.f32.mrb[0].mxu0
    %544 = vdwg.mxu0
    %v546 = vsel %vm32, %v315, 0
    %548 = vmatprep.subr.mxu0 0.0
    %549 = vmatpush1.msra.mxu0 %v546
    %550 = vmatprep.subr.mxu0 0.0
    %551 = vmatpush1.msra.mxu0 0.0
    %552 = vmatprep.subr.mxu0 0.0
    %553 = vmatpush1.msra.mxu0 0.0
    %554 = vmatprep.subr.mxu0 0.0
    %555 = vmatpush1.msra.mxu0 0.0
    %556 = vmatprep.subr.mxu0 0.0
    %557 = vmatpush1.msra.mxu0 0.0
    %558 = vmatprep.subr.mxu0 0.0
    %559 = vmatpush1.msra.mxu0 0.0
    %560 = vmatprep.subr.mxu0 0.0
    %561 = vmatpush1.msra.mxu0 0.0
    %562 = vmatprep.subr.mxu0 0.0
    %563 = vmatpush1.msra.mxu0 0.0
    %564 = vmatprep.subr.mxu0 0.0
    %565 = vmatpush1.msra.mxu0 0.0
    %566 = vmatprep.subr.mxu0 0.0
    %567 = vmatpush1.msra.mxu0 0.0
    %568 = vmatprep.subr.mxu0 0.0
    %569 = vmatpush1.msra.mxu0 0.0
    %570 = vmatprep.subr.mxu0 0.0
    %571 = vmatpush1.msra.mxu0 0.0
    %572 = vmatprep.subr.mxu0 0.0
    %573 = vmatpush1.msra.mxu0 0.0
    %574 = vmatprep.subr.mxu0 0.0
    %575 = vmatpush1.msra.mxu0 0.0
    %576 = vmatprep.subr.mxu0 0.0
    %577 = vmatpush1.msra.mxu0 0.0
    %578 = vmatprep.subr.mxu0 0.0
    %579 = vmatpush1.msra.mxu0 0.0
    %580 = vmatprep.subr.mxu0 0.0
    %581 = vmatpush1.msra.mxu0 0.0
    %582 = vmatprep.subr.mxu0 0.0
    %583 = vmatpush1.msra.mxu0 0.0
    %584 = vmatprep.subr.mxu0 0.0
    %585 = vmatpush1.msra.mxu0 0.0
    %586 = vmatprep.subr.mxu0 0.0
    %587 = vmatpush1.msra.mxu0 0.0
    %588 = vmatprep.subr.mxu0 0.0
    %589 = vmatpush1.msra.mxu0 0.0
    %590 = vmatprep.subr.mxu0 0.0
    %591 = vmatpush1.msra.mxu0 0.0
    %592 = vmatprep.subr.mxu0 0.0
    %593 = vmatpush1.msra.mxu0 0.0
    %594 = vmatprep.subr.mxu0 0.0
    %595 = vmatpush1.msra.mxu0 0.0
    %596 = vmatprep.subr.mxu0 0.0
    %597 = vmatpush1.msra.mxu0 0.0
    %598 = vmatprep.subr.mxu0 0.0
    %599 = vmatpush1.msra.mxu0 0.0
    %600 = vmatprep.subr.mxu0 0.0
    %601 = vmatpush1.msra.mxu0 0.0
    %602 = vmatprep.subr.mxu0 0.0
    %603 = vmatpush1.msra.mxu0 0.0
    %604 = vmatprep.subr.mxu0 0.0
    %605 = vmatpush1.msra.mxu0 0.0
    %606 = vmatprep.subr.mxu0 0.0
    %607 = vmatpush1.msra.mxu0 0.0
    %608 = vmatprep.subr.mxu0 0.0
    %609 = vmatpush1.msra.mxu0 0.0
    %610 = vmatprep.subr.mxu0 0.0
    %611 = vmatpush1.msra.mxu0 0.0
    %612 = vmatprep.mubr.f32.mxu0 0.0
    %613 = vmatmul.mubr.f32.gmra.mrb[0].mxu0 %v30
    %v614 = vpop.f32.mrb[0].mxu0
    %v615 = vadd.f32 0.0, %v614
    %v616 = vpop.f32.mrb[0].mxu0
    %617 = vdwg.mxu0
    %v618 = vsub.f32 %v201, %v469
    %v619 = vsub.f32 %v615, %v542
    %v620 = vmul.f32 %v618, %v618
    %v621 = vmul.f32 %v619, %v619
    %vm622 = vcmask 130048
    %v624 = vsel %vm622, %v621, 0
    %626 = vmatprep.subr.mxu0 0.0
    %627 = vmatpush1.msra.mxu0 %v316
    %628 = vmatprep.subr.mxu0 0.0
    %629 = vmatpush1.msra.mxu0 %v317
    %630 = vmatprep.subr.mxu0 0.0
    %631 = vmatpush1.msra.mxu0 0.0
    %632 = vmatprep.subr.mxu0 0.0
    %633 = vmatpush1.msra.mxu0 0.0
    %634 = vmatprep.subr.mxu0 0.0
    %635 = vmatpush1.msra.mxu0 0.0
    %636 = vmatprep.subr.mxu0 0.0
    %637 = vmatpush1.msra.mxu0 0.0
    %638 = vmatprep.subr.mxu0 0.0
    %639 = vmatpush1.msra.mxu0 0.0
    %640 = vmatprep.subr.mxu0 0.0
    %641 = vmatpush1.msra.mxu0 0.0
    %642 = vmatprep.subr.mxu0 0.0
    %643 = vmatpush1.msra.mxu0 0.0
    %644 = vmatprep.subr.mxu0 0.0
    %645 = vmatpush1.msra.mxu0 0.0
    %646 = vmatprep.subr.mxu0 0.0
    %647 = vmatpush1.msra.mxu0 0.0
    %648 = vmatprep.subr.mxu0 0.0
    %649 = vmatpush1.msra.mxu0 0.0
    %650 = vmatprep.subr.mxu0 0.0
    %651 = vmatpush1.msra.mxu0 0.0
    %652 = vmatprep.subr.mxu0 0.0
    %653 = vmatpush1.msra.mxu0 0.0
    %654 = vmatprep.subr.mxu0 0.0
    %655 = vmatpush1.msra.mxu0 0.0
    %656 = vmatprep.subr.mxu0 0.0
    %657 = vmatpush1.msra.mxu0 0.0
    %658 = vmatprep.subr.mxu0 0.0
    %659 = vmatpush1.msra.mxu0 0.0
    %660 = vmatprep.subr.mxu0 0.0
    %661 = vmatpush1.msra.mxu0 0.0
    %662 = vmatprep.subr.mxu0 0.0
    %663 = vmatpush1.msra.mxu0 0.0
    %664 = vmatprep.subr.mxu0 0.0
    %665 = vmatpush1.msra.mxu0 0.0
    %666 = vmatprep.subr.mxu0 0.0
    %667 = vmatpush1.msra.mxu0 0.0
    %668 = vmatprep.subr.mxu0 0.0
    %669 = vmatpush1.msra.mxu0 0.0
    %670 = vmatprep.subr.mxu0 0.0
    %671 = vmatpush1.msra.mxu0 0.0
    %672 = vmatprep.subr.mxu0 0.0
    %673 = vmatpush1.msra.mxu0 0.0
    %674 = vmatprep.subr.mxu0 0.0
    %675 = vmatpush1.msra.mxu0 0.0
    %676 = vmatprep.subr.mxu0 0.0
    %677 = vmatpush1.msra.mxu0 0.0
    %678 = vmatprep.subr.mxu0 0.0
    %679 = vmatpush1.msra.mxu0 0.0
    %680 = vmatprep.subr.mxu0 0.0
    %681 = vmatpush1.msra.mxu0 0.0
    %682 = vmatprep.subr.mxu0 0.0
    %683 = vmatpush1.msra.mxu0 0.0
    %684 = vmatprep.subr.mxu0 0.0
    %685 = vmatpush1.msra.mxu0 0.0
    %686 = vmatprep.subr.mxu0 0.0
    %687 = vmatpush1.msra.mxu0 0.0
    %688 = vmatprep.subr.mxu0 0.0
    %689 = vmatpush1.msra.mxu0 0.0
    %690 = vmatprep.mubr.f32.mxu0 0.0
    %691 = vmatmul.mubr.f32.gmra.mrb[0].mxu0 %v624
    %v692 = vpop.f32.mrb[0].mxu0
    %v693 = vadd.f32 0.0, %v692
    %v694 = vpop.f32.mrb[0].mxu0
    %695 = vdwg.mxu0
    %696 = vmatprep.subr.mxu0 0.0
    %697 = vmatpush1.msra.mxu0 %v296
    %698 = vmatprep.subr.mxu0 0.0
    %699 = vmatpush1.msra.mxu0 %v297
    %700 = vmatprep.subr.mxu0 0.0
    %701 = vmatpush1.msra.mxu0 %v298
    %702 = vmatprep.subr.mxu0 0.0
    %703 = vmatpush1.msra.mxu0 %v299
    %704 = vmatprep.subr.mxu0 0.0
    %705 = vmatpush1.msra.mxu0 %v300
    %706 = vmatprep.subr.mxu0 0.0
    %707 = vmatpush1.msra.mxu0 %v301
    %708 = vmatprep.subr.mxu0 0.0
    %709 = vmatpush1.msra.mxu0 %v302
    %710 = vmatprep.subr.mxu0 0.0
    %711 = vmatpush1.msra.mxu0 %v303
    %712 = vmatprep.subr.mxu0 0.0
    %713 = vmatpush1.msra.mxu0 %v304
    %714 = vmatprep.subr.mxu0 0.0
    %715 = vmatpush1.msra.mxu0 %v305
    %716 = vmatprep.subr.mxu0 0.0
    %717 = vmatpush1.msra.mxu0 %v306
    %718 = vmatprep.subr.mxu0 0.0
    %719 = vmatpush1.msra.mxu0 %v307
    %720 = vmatprep.subr.mxu0 0.0
    %721 = vmatpush1.msra.mxu0 %v308
    %722 = vmatprep.subr.mxu0 0.0
    %723 = vmatpush1.msra.mxu0 %v309
    %724 = vmatprep.subr.mxu0 0.0
    %725 = vmatpush1.msra.mxu0 %v310
    %726 = vmatprep.subr.mxu0 0.0
    %727 = vmatpush1.msra.mxu0 %v311
    %728 = vmatprep.subr.mxu0 0.0
    %729 = vmatpush1.msra.mxu0 0.0
    %730 = vmatprep.subr.mxu0 0.0
    %731 = vmatpush1.msra.mxu0 0.0
    %732 = vmatprep.subr.mxu0 0.0
    %733 = vmatpush1.msra.mxu0 0.0
    %734 = vmatprep.subr.mxu0 0.0
    %735 = vmatpush1.msra.mxu0 0.0
    %736 = vmatprep.subr.mxu0 0.0
    %737 = vmatpush1.msra.mxu0 0.0
    %738 = vmatprep.subr.mxu0 0.0
    %739 = vmatpush1.msra.mxu0 0.0
    %740 = vmatprep.subr.mxu0 0.0
    %741 = vmatpush1.msra.mxu0 0.0
    %742 = vmatprep.subr.mxu0 0.0
    %743 = vmatpush1.msra.mxu0 0.0
    %744 = vmatprep.subr.mxu0 0.0
    %745 = vmatpush1.msra.mxu0 0.0
    %746 = vmatprep.subr.mxu0 0.0
    %747 = vmatpush1.msra.mxu0 0.0
    %748 = vmatprep.subr.mxu0 0.0
    %749 = vmatpush1.msra.mxu0 0.0
    %750 = vmatprep.subr.mxu0 0.0
    %751 = vmatpush1.msra.mxu0 0.0
    %752 = vmatprep.subr.mxu0 0.0
    %753 = vmatpush1.msra.mxu0 0.0
    %754 = vmatprep.subr.mxu0 0.0
    %755 = vmatpush1.msra.mxu0 0.0
    %756 = vmatprep.subr.mxu0 0.0
    %757 = vmatpush1.msra.mxu0 0.0
    %758 = vmatprep.subr.mxu0 0.0
    %759 = vmatpush1.msra.mxu0 0.0
    %760 = vmatprep.mubr.f32.mxu0 0.0
    %761 = vmatmul.mubr.f32.gmra.mrb[0].mxu0 %v620
    %v762 = vpop.f32.mrb[0].mxu0
    %v763 = vadd.f32 %v693, %v762
    %v764 = vpop.f32.mrb[0].mxu0
    %765 = vdwg.mxu0
    %v766 = vmul.f32 %v763, 0.027777778
    %v767 = vadd.f32 %v766, 1e-05
    %v768 = vrsqrt.pop %v767
    %v770 = vsel %vm28, %v768, 0
    %772 = vmatprep.subr.mxu0 0.0
    %773 = vmatpush1.msra.mxu0 %v400
    %774 = vmatprep.subr.mxu0 0.0
    %775 = vmatpush1.msra.mxu0 0.0
    %776 = vmatprep.subr.mxu0 0.0
    %777 = vmatpush1.msra.mxu0 0.0
    %778 = vmatprep.subr.mxu0 0.0
    %779 = vmatpush1.msra.mxu0 0.0
    %780 = vmatprep.subr.mxu0 0.0
    %781 = vmatpush1.msra.mxu0 0.0
    %782 = vmatprep.subr.mxu0 0.0
    %783 = vmatpush1.msra.mxu0 0.0
    %784 = vmatprep.subr.mxu0 0.0
    %785 = vmatpush1.msra.mxu0 0.0
    %786 = vmatprep.subr.mxu0 0.0
    %787 = vmatpush1.msra.mxu0 0.0
    %788 = vmatprep.subr.mxu0 0.0
    %789 = vmatpush1.msra.mxu0 0.0
    %790 = vmatprep.subr.mxu0 0.0
    %791 = vmatpush1.msra.mxu0 0.0
    %792 = vmatprep.subr.mxu0 0.0
    %793 = vmatpush1.msra.mxu0 0.0
    %794 = vmatprep.subr.mxu0 0.0
    %795 = vmatpush1.msra.mxu0 0.0
    %796 = vmatprep.subr.mxu0 0.0
    %797 = vmatpush1.msra.mxu0 0.0
    %798 = vmatprep.subr.mxu0 0.0
    %799 = vmatpush1.msra.mxu0 0.0
    %800 = vmatprep.subr.mxu0 0.0
    %801 = vmatpush1.msra.mxu0 0.0
    %802 = vmatprep.subr.mxu0 0.0
    %803 = vmatpush1.msra.mxu0 0.0
    %804 = vmatprep.subr.mxu0 0.0
    %805 = vmatpush1.msra.mxu0 0.0
    %806 = vmatprep.subr.mxu0 0.0
    %807 = vmatpush1.msra.mxu0 0.0
    %808 = vmatprep.subr.mxu0 0.0
    %809 = vmatpush1.msra.mxu0 0.0
    %810 = vmatprep.subr.mxu0 0.0
    %811 = vmatpush1.msra.mxu0 0.0
    %812 = vmatprep.subr.mxu0 0.0
    %813 = vmatpush1.msra.mxu0 0.0
    %814 = vmatprep.subr.mxu0 0.0
    %815 = vmatpush1.msra.mxu0 0.0
    %816 = vmatprep.subr.mxu0 0.0
    %817 = vmatpush1.msra.mxu0 0.0
    %818 = vmatprep.subr.mxu0 0.0
    %819 = vmatpush1.msra.mxu0 0.0
    %820 = vmatprep.subr.mxu0 0.0
    %821 = vmatpush1.msra.mxu0 0.0
    %822 = vmatprep.subr.mxu0 0.0
    %823 = vmatpush1.msra.mxu0 0.0
    %824 = vmatprep.subr.mxu0 0.0
    %825 = vmatpush1.msra.mxu0 0.0
    %826 = vmatprep.subr.mxu0 0.0
    %827 = vmatpush1.msra.mxu0 0.0
    %828 = vmatprep.subr.mxu0 0.0
    %829 = vmatpush1.msra.mxu0 0.0
    %830 = vmatprep.subr.mxu0 0.0
    %831 = vmatpush1.msra.mxu0 0.0
    %832 = vmatprep.subr.mxu0 0.0
    %833 = vmatpush1.msra.mxu0 0.0
    %834 = vmatprep.subr.mxu0 0.0
    %835 = vmatpush1.msra.mxu0 0.0
    %836 = vmatprep.mubr.f32.mxu0 0.0
    %837 = vmatmul.mubr.f32.gmra.mrb[0].mxu0 %v770
    %v838 = vpop.f32.mrb[0].mxu0
    %v839 = vadd.f32 0.0, %v838
    %v840 = vpop.f32.mrb[0].mxu0
    %841 = vdwg.mxu0
    %842 = vmatprep.subr.mxu0 0.0
    %843 = vmatpush1.msra.mxu0 %v473
    %844 = vmatprep.subr.mxu0 0.0
    %845 = vmatpush1.msra.mxu0 0.0
    %846 = vmatprep.subr.mxu0 0.0
    %847 = vmatpush1.msra.mxu0 0.0
    %848 = vmatprep.subr.mxu0 0.0
    %849 = vmatpush1.msra.mxu0 0.0
    %850 = vmatprep.subr.mxu0 0.0
    %851 = vmatpush1.msra.mxu0 0.0
    %852 = vmatprep.subr.mxu0 0.0
    %853 = vmatpush1.msra.mxu0 0.0
    %854 = vmatprep.subr.mxu0 0.0
    %855 = vmatpush1.msra.mxu0 0.0
    %856 = vmatprep.subr.mxu0 0.0
    %857 = vmatpush1.msra.mxu0 0.0
    %858 = vmatprep.subr.mxu0 0.0
    %859 = vmatpush1.msra.mxu0 0.0
    %860 = vmatprep.subr.mxu0 0.0
    %861 = vmatpush1.msra.mxu0 0.0
    %862 = vmatprep.subr.mxu0 0.0
    %863 = vmatpush1.msra.mxu0 0.0
    %864 = vmatprep.subr.mxu0 0.0
    %865 = vmatpush1.msra.mxu0 0.0
    %866 = vmatprep.subr.mxu0 0.0
    %867 = vmatpush1.msra.mxu0 0.0
    %868 = vmatprep.subr.mxu0 0.0
    %869 = vmatpush1.msra.mxu0 0.0
    %870 = vmatprep.subr.mxu0 0.0
    %871 = vmatpush1.msra.mxu0 0.0
    %872 = vmatprep.subr.mxu0 0.0
    %873 = vmatpush1.msra.mxu0 0.0
    %874 = vmatprep.subr.mxu0 0.0
    %875 = vmatpush1.msra.mxu0 0.0
    %876 = vmatprep.subr.mxu0 0.0
    %877 = vmatpush1.msra.mxu0 0.0
    %878 = vmatprep.subr.mxu0 0.0
    %879 = vmatpush1.msra.mxu0 0.0
    %880 = vmatprep.subr.mxu0 0.0
    %881 = vmatpush1.msra.mxu0 0.0
    %882 = vmatprep.subr.mxu0 0.0
    %883 = vmatpush1.msra.mxu0 0.0
    %884 = vmatprep.subr.mxu0 0.0
    %885 = vmatpush1.msra.mxu0 0.0
    %886 = vmatprep.subr.mxu0 0.0
    %887 = vmatpush1.msra.mxu0 0.0
    %888 = vmatprep.subr.mxu0 0.0
    %889 = vmatpush1.msra.mxu0 0.0
    %890 = vmatprep.subr.mxu0 0.0
    %891 = vmatpush1.msra.mxu0 0.0
    %892 = vmatprep.subr.mxu0 0.0
    %893 = vmatpush1.msra.mxu0 0.0
    %894 = vmatprep.subr.mxu0 0.0
    %895 = vmatpush1.msra.mxu0 0.0
    %896 = vmatprep.subr.mxu0 0.0
    %897 = vmatpush1.msra.mxu0 0.0
    %898 = vmatprep.subr.mxu0 0.0
    %899 = vmatpush1.msra.mxu0 0.0
    %900 = vmatprep.subr.mxu0 0.0
    %901 = vmatpush1.msra.mxu0 0.0
    %902 = vmatprep.subr.mxu0 0.0
    %903 = vmatpush1.msra.mxu0 0.0
    %904 = vmatprep.subr.mxu0 0.0
    %905 = vmatpush1.msra.mxu0 0.0
    %906 = vmatprep.mubr.f32.mxu0 0.0
    %907 = vmatmul.mubr.f32.gmra.mrb[0].mxu0 %v770
    %v908 = vpop.f32.mrb[0].mxu0
    %v909 = vadd.f32 0.0, %v908
    %v910 = vpop.f32.mrb[0].mxu0
    %911 = vdwg.mxu0
    %v912 = vmul.f32 %v618, %v839
    %v913 = vld [vmem:[%s2 + $0x30] sm:$0xff]
    %v914 = vld [vmem:[%s2 + $0x40] sm:$0xff]
    %v915 = vld [vmem:[%s2 + $0x50] sm:$0xff]
    %v916 = vld [vmem:[%s2 + $0x60] sm:$0xff]
    %v917 = vld [vmem:[%s2 + $0x70] sm:$0xff]
    %v918 = vld [vmem:[%s2 + $0x80] sm:$0xff]
    %v919 = vld [vmem:[%s2 + $0x90] sm:$0xff]
    %v920 = vld [vmem:[%s2 + $0xa0] sm:$0xff]
    %v921 = vld [vmem:[%s2 + $0xb0] sm:$0xff]
    %v922 = vld [vmem:[%s2 + $0xc0] sm:$0xff]
    %v923 = vld [vmem:[%s2 + $0xd0] sm:$0xff]
    %v924 = vld [vmem:[%s2 + $0xe0] sm:$0xff]
    %v925 = vld [vmem:[%s2 + $0xf0] sm:$0xff]
    %v926 = vld [vmem:[%s2 + $0x100] sm:$0xff]
    %v927 = vld [vmem:[%s2 + $0x110] sm:$0xff]
    %v928 = vld [vmem:[%s2 + $0x120] sm:$0xff]
    %v929 = vmul.f32 %v619, %v909
    %v930 = vld [vmem:[%s2 + $0x130] sm:$0xff]
    %v931 = vld [vmem:[%s2 + $0x140] sm:$0xff]
    %v933 = vsel %vm622, %v929, 0
    %935 = vmatprep.subr.mxu0 0.0
    %936 = vmatpush1.msra.mxu0 %v930
    %937 = vmatprep.subr.mxu0 0.0
    %938 = vmatpush1.msra.mxu0 %v931
    %939 = vmatprep.subr.mxu0 0.0
    %940 = vmatpush1.msra.mxu0 0.0
    %941 = vmatprep.subr.mxu0 0.0
    %942 = vmatpush1.msra.mxu0 0.0
    %943 = vmatprep.subr.mxu0 0.0
    %944 = vmatpush1.msra.mxu0 0.0
    %945 = vmatprep.subr.mxu0 0.0
    %946 = vmatpush1.msra.mxu0 0.0
    %947 = vmatprep.subr.mxu0 0.0
    %948 = vmatpush1.msra.mxu0 0.0
    %949 = vmatprep.subr.mxu0 0.0
    %950 = vmatpush1.msra.mxu0 0.0
    %951 = vmatprep.subr.mxu0 0.0
    %952 = vmatpush1.msra.mxu0 0.0
    %953 = vmatprep.subr.mxu0 0.0
    %954 = vmatpush1.msra.mxu0 0.0
    %955 = vmatprep.subr.mxu0 0.0
    %956 = vmatpush1.msra.mxu0 0.0
    %957 = vmatprep.subr.mxu0 0.0
    %958 = vmatpush1.msra.mxu0 0.0
    %959 = vmatprep.subr.mxu0 0.0
    %960 = vmatpush1.msra.mxu0 0.0
    %961 = vmatprep.subr.mxu0 0.0
    %962 = vmatpush1.msra.mxu0 0.0
    %963 = vmatprep.subr.mxu0 0.0
    %964 = vmatpush1.msra.mxu0 0.0
    %965 = vmatprep.subr.mxu0 0.0
    %966 = vmatpush1.msra.mxu0 0.0
    %967 = vmatprep.subr.mxu0 0.0
    %968 = vmatpush1.msra.mxu0 0.0
    %969 = vmatprep.subr.mxu0 0.0
    %970 = vmatpush1.msra.mxu0 0.0
    %971 = vmatprep.subr.mxu0 0.0
    %972 = vmatpush1.msra.mxu0 0.0
    %973 = vmatprep.subr.mxu0 0.0
    %974 = vmatpush1.msra.mxu0 0.0
    %975 = vmatprep.subr.mxu0 0.0
    %976 = vmatpush1.msra.mxu0 0.0
    %977 = vmatprep.subr.mxu0 0.0
    %978 = vmatpush1.msra.mxu0 0.0
    %979 = vmatprep.subr.mxu0 0.0
    %980 = vmatpush1.msra.mxu0 0.0
    %981 = vmatprep.subr.mxu0 0.0
    %982 = vmatpush1.msra.mxu0 0.0
    %983 = vmatprep.subr.mxu0 0.0
    %984 = vmatpush1.msra.mxu0 0.0
    %985 = vmatprep.subr.mxu0 0.0
    %986 = vmatpush1.msra.mxu0 0.0
    %987 = vmatprep.subr.mxu0 0.0
    %988 = vmatpush1.msra.mxu0 0.0
    %989 = vmatprep.subr.mxu0 0.0
    %990 = vmatpush1.msra.mxu0 0.0
    %991 = vmatprep.subr.mxu0 0.0
    %992 = vmatpush1.msra.mxu0 0.0
    %993 = vmatprep.subr.mxu0 0.0
    %994 = vmatpush1.msra.mxu0 0.0
    %995 = vmatprep.subr.mxu0 0.0
    %996 = vmatpush1.msra.mxu0 0.0
    %997 = vmatprep.subr.mxu0 0.0
    %998 = vmatpush1.msra.mxu0 0.0
    %999 = vmatprep.mubr.f32.mxu0 0.0
    %1000 = vmatmul.mubr.f32.gmra.mrb[0].mxu0 %v933
    %v1001 = vpop.f32.mrb[0].mxu0
    %v1002 = vadd.f32 0.0, %v1001
    %v1003 = vpop.f32.mrb[0].mxu0
    %1004 = vdwg.mxu0
    %1005 = vmatprep.subr.mxu0 0.0
    %1006 = vmatpush1.msra.mxu0 %v913
    %1007 = vmatprep.subr.mxu0 0.0
    %1008 = vmatpush1.msra.mxu0 %v914
    %1009 = vmatprep.subr.mxu0 0.0
    %1010 = vmatpush1.msra.mxu0 %v915
    %1011 = vmatprep.subr.mxu0 0.0
    %1012 = vmatpush1.msra.mxu0 %v916
    %1013 = vmatprep.subr.mxu0 0.0
    %1014 = vmatpush1.msra.mxu0 %v917
    %1015 = vmatprep.subr.mxu0 0.0
    %1016 = vmatpush1.msra.mxu0 %v918
    %1017 = vmatprep.subr.mxu0 0.0
    %1018 = vmatpush1.msra.mxu0 %v919
    %1019 = vmatprep.subr.mxu0 0.0
    %1020 = vmatpush1.msra.mxu0 %v920
    %1021 = vmatprep.subr.mxu0 0.0
    %1022 = vmatpush1.msra.mxu0 %v921
    %1023 = vmatprep.subr.mxu0 0.0
    %1024 = vmatpush1.msra.mxu0 %v922
    %1025 = vmatprep.subr.mxu0 0.0
    %1026 = vmatpush1.msra.mxu0 %v923
    %1027 = vmatprep.subr.mxu0 0.0
    %1028 = vmatpush1.msra.mxu0 %v924
    %1029 = vmatprep.subr.mxu0 0.0
    %1030 = vmatpush1.msra.mxu0 %v925
    %1031 = vmatprep.subr.mxu0 0.0
    %1032 = vmatpush1.msra.mxu0 %v926
    %1033 = vmatprep.subr.mxu0 0.0
    %1034 = vmatpush1.msra.mxu0 %v927
    %1035 = vmatprep.subr.mxu0 0.0
    %1036 = vmatpush1.msra.mxu0 %v928
    %1037 = vmatprep.subr.mxu0 0.0
    %1038 = vmatpush1.msra.mxu0 0.0
    %1039 = vmatprep.subr.mxu0 0.0
    %1040 = vmatpush1.msra.mxu0 0.0
    %1041 = vmatprep.subr.mxu0 0.0
    %1042 = vmatpush1.msra.mxu0 0.0
    %1043 = vmatprep.subr.mxu0 0.0
    %1044 = vmatpush1.msra.mxu0 0.0
    %1045 = vmatprep.subr.mxu0 0.0
    %1046 = vmatpush1.msra.mxu0 0.0
    %1047 = vmatprep.subr.mxu0 0.0
    %1048 = vmatpush1.msra.mxu0 0.0
    %1049 = vmatprep.subr.mxu0 0.0
    %1050 = vmatpush1.msra.mxu0 0.0
    %1051 = vmatprep.subr.mxu0 0.0
    %1052 = vmatpush1.msra.mxu0 0.0
    %1053 = vmatprep.subr.mxu0 0.0
    %1054 = vmatpush1.msra.mxu0 0.0
    %1055 = vmatprep.subr.mxu0 0.0
    %1056 = vmatpush1.msra.mxu0 0.0
    %1057 = vmatprep.subr.mxu0 0.0
    %1058 = vmatpush1.msra.mxu0 0.0
    %1059 = vmatprep.subr.mxu0 0.0
    %1060 = vmatpush1.msra.mxu0 0.0
    %1061 = vmatprep.subr.mxu0 0.0
    %1062 = vmatpush1.msra.mxu0 0.0
    %1063 = vmatprep.subr.mxu0 0.0
    %1064 = vmatpush1.msra.mxu0 0.0
    %1065 = vmatprep.subr.mxu0 0.0
    %1066 = vmatpush1.msra.mxu0 0.0
    %1067 = vmatprep.subr.mxu0 0.0
    %1068 = vmatpush1.msra.mxu0 0.0
    %1069 = vmatprep.mubr.f32.mxu0 0.0
    %1070 = vmatmul.mubr.f32.gmra.mrb[0].mxu0 %v912
    %v1071 = vpop.f32.mrb[0].mxu0
    %v1072 = vadd.f32 %v1002, %v1071
    %v1073 = vpop.f32.mrb[0].mxu0
    %1074 = vdwg.mxu0
    %v1075 = vlaneseq
    %v1076 = vshrl.u32 %v1075, 7
    %v1077 = vsub.s32 1, %v1076
    %v1078 = vrot.slane %v20, %v1077
    %v1079 = vadd.f32 %v1072, %v1078
    %v1081 = vsel %vm28, %v295, 0
    %v1084 = vsel %vm32, %v314, 0
    %1086 = vmatprep.subr.mxu0 0.0
    %1087 = vmatpush1.msra.mxu0 %v1084
    %1088 = vmatprep.subr.mxu0 0.0
    %1089 = vmatpush1.msra.mxu0 0.0
    %1090 = vmatprep.subr.mxu0 0.0
    %1091 = vmatpush1.msra.mxu0 0.0
    %1092 = vmatprep.subr.mxu0 0.0
    %1093 = vmatpush1.msra.mxu0 0.0
    %1094 = vmatprep.subr.mxu0 0.0
    %1095 = vmatpush1.msra.mxu0 0.0
    %1096 = vmatprep.subr.mxu0 0.0
    %1097 = vmatpush1.msra.mxu0 0.0
    %1098 = vmatprep.subr.mxu0 0.0
    %1099 = vmatpush1.msra.mxu0 0.0
    %1100 = vmatprep.subr.mxu0 0.0
    %1101 = vmatpush1.msra.mxu0 0.0
    %1102 = vmatprep.subr.mxu0 0.0
    %1103 = vmatpush1.msra.mxu0 0.0
    %1104 = vmatprep.subr.mxu0 0.0
    %1105 = vmatpush1.msra.mxu0 0.0
    %1106 = vmatprep.subr.mxu0 0.0
    %1107 = vmatpush1.msra.mxu0 0.0
    %1108 = vmatprep.subr.mxu0 0.0
    %1109 = vmatpush1.msra.mxu0 0.0
    %1110 = vmatprep.subr.mxu0 0.0
    %1111 = vmatpush1.msra.mxu0 0.0
    %1112 = vmatprep.subr.mxu0 0.0
    %1113 = vmatpush1.msra.mxu0 0.0
    %1114 = vmatprep.subr.mxu0 0.0
    %1115 = vmatpush1.msra.mxu0 0.0
    %1116 = vmatprep.subr.mxu0 0.0
    %1117 = vmatpush1.msra.mxu0 0.0
    %1118 = vmatprep.subr.mxu0 0.0
    %1119 = vmatpush1.msra.mxu0 0.0
    %1120 = vmatprep.subr.mxu0 0.0
    %1121 = vmatpush1.msra.mxu0 0.0
    %1122 = vmatprep.subr.mxu0 0.0
    %1123 = vmatpush1.msra.mxu0 0.0
    %1124 = vmatprep.subr.mxu0 0.0
    %1125 = vmatpush1.msra.mxu0 0.0
    %1126 = vmatprep.subr.mxu0 0.0
    %1127 = vmatpush1.msra.mxu0 0.0
    %1128 = vmatprep.subr.mxu0 0.0
    %1129 = vmatpush1.msra.mxu0 0.0
    %1130 = vmatprep.subr.mxu0 0.0
    %1131 = vmatpush1.msra.mxu0 0.0
    %1132 = vmatprep.subr.mxu0 0.0
    %1133 = vmatpush1.msra.mxu0 0.0
    %1134 = vmatprep.subr.mxu0 0.0
    %1135 = vmatpush1.msra.mxu0 0.0
    %1136 = vmatprep.subr.mxu0 0.0
    %1137 = vmatpush1.msra.mxu0 0.0
    %1138 = vmatprep.subr.mxu0 0.0
    %1139 = vmatpush1.msra.mxu0 0.0
    %1140 = vmatprep.subr.mxu0 0.0
    %1141 = vmatpush1.msra.mxu0 0.0
    %1142 = vmatprep.subr.mxu0 0.0
    %1143 = vmatpush1.msra.mxu0 0.0
    %1144 = vmatprep.subr.mxu0 0.0
    %1145 = vmatpush1.msra.mxu0 0.0
    %1146 = vmatprep.subr.mxu0 0.0
    %1147 = vmatpush1.msra.mxu0 0.0
    %1148 = vmatprep.subr.mxu0 0.0
    %1149 = vmatpush1.msra.mxu0 0.0
    %1150 = vmatprep.mubr.f32.mxu0 0.0
    %1151 = vmatmul.mubr.f32.gmra.mrb[0].mxu0 %v1081
    %v1152 = vpop.f32.mrb[0].mxu0
    %v1153 = vadd.f32 0.0, %v1152
    %v1154 = vpop.f32.mrb[0].mxu0
    %1155 = vdwg.mxu0
    %v1156 = vmul.f32 %v1079, %v1153
    %v1158 = vsel %vm211, %v1156, 0
    %1160 = vmatprep.subr.mxu0 0.0
    %1161 = vmatpush1.msra.mxu0 %v318
    %1162 = vmatprep.subr.mxu0 0.0
    %1163 = vmatpush1.msra.mxu0 %v319
    %1164 = vmatprep.subr.mxu0 0.0
    %1165 = vmatpush1.msra.mxu0 %v320
    %1166 = vmatprep.subr.mxu0 0.0
    %1167 = vmatpush1.msra.mxu0 %v321
    %1168 = vmatprep.subr.mxu0 0.0
    %1169 = vmatpush1.msra.mxu0 0.0
    %1170 = vmatprep.subr.mxu0 0.0
    %1171 = vmatpush1.msra.mxu0 0.0
    %1172 = vmatprep.subr.mxu0 0.0
    %1173 = vmatpush1.msra.mxu0 0.0
    %1174 = vmatprep.subr.mxu0 0.0
    %1175 = vmatpush1.msra.mxu0 0.0
    %1176 = vmatprep.subr.mxu0 0.0
    %1177 = vmatpush1.msra.mxu0 0.0
    %1178 = vmatprep.subr.mxu0 0.0
    %1179 = vmatpush1.msra.mxu0 0.0
    %1180 = vmatprep.subr.mxu0 0.0
    %1181 = vmatpush1.msra.mxu0 0.0
    %1182 = vmatprep.subr.mxu0 0.0
    %1183 = vmatpush1.msra.mxu0 0.0
    %1184 = vmatprep.subr.mxu0 0.0
    %1185 = vmatpush1.msra.mxu0 0.0
    %1186 = vmatprep.subr.mxu0 0.0
    %1187 = vmatpush1.msra.mxu0 0.0
    %1188 = vmatprep.subr.mxu0 0.0
    %1189 = vmatpush1.msra.mxu0 0.0
    %1190 = vmatprep.subr.mxu0 0.0
    %1191 = vmatpush1.msra.mxu0 0.0
    %1192 = vmatprep.subr.mxu0 0.0
    %1193 = vmatpush1.msra.mxu0 0.0
    %1194 = vmatprep.subr.mxu0 0.0
    %1195 = vmatpush1.msra.mxu0 0.0
    %1196 = vmatprep.subr.mxu0 0.0
    %1197 = vmatpush1.msra.mxu0 0.0
    %1198 = vmatprep.subr.mxu0 0.0
    %1199 = vmatpush1.msra.mxu0 0.0
    %1200 = vmatprep.subr.mxu0 0.0
    %1201 = vmatpush1.msra.mxu0 0.0
    %1202 = vmatprep.subr.mxu0 0.0
    %1203 = vmatpush1.msra.mxu0 0.0
    %1204 = vmatprep.subr.mxu0 0.0
    %1205 = vmatpush1.msra.mxu0 0.0
    %1206 = vmatprep.subr.mxu0 0.0
    %1207 = vmatpush1.msra.mxu0 0.0
    %1208 = vmatprep.subr.mxu0 0.0
    %1209 = vmatpush1.msra.mxu0 0.0
    %1210 = vmatprep.subr.mxu0 0.0
    %1211 = vmatpush1.msra.mxu0 0.0
    %1212 = vmatprep.subr.mxu0 0.0
    %1213 = vmatpush1.msra.mxu0 0.0
    %1214 = vmatprep.subr.mxu0 0.0
    %1215 = vmatpush1.msra.mxu0 0.0
    %1216 = vmatprep.subr.mxu0 0.0
    %1217 = vmatpush1.msra.mxu0 0.0
    %1218 = vmatprep.subr.mxu0 0.0
    %1219 = vmatpush1.msra.mxu0 0.0
    %1220 = vmatprep.subr.mxu0 0.0
    %1221 = vmatpush1.msra.mxu0 0.0
    %1222 = vmatprep.subr.mxu0 0.0
    %1223 = vmatpush1.msra.mxu0 0.0
    %1224 = vmatprep.mubr.f32.mxu0 0.0
    %1225 = vmatmul.mubr.f32.gmra.mrb[0].mxu0 %v1158
    %v1226 = vpop.f32.mrb[0].mxu0
    %v1227 = vadd.f32 0.0, %v1226
    %v1228 = vpop.f32.mrb[0].mxu0
    %1229 = vdwg.mxu0
    %vm1230 = vcmask 64512
    %1231 = vst.msk [vmem:[#allocation2] sm:$0xff] %vm1230, %v1227
    // Predicated region
    $region18: #{tpu_custom_call.1} parent=1 // pred_check
      _
    $region19: #{tpu_custom_call.1} parent=1 // pred_check_branch
      %1233 = sbr.rel (0) target = $region21
    $region20: #{tpu_custom_call.1} parent=1 // pred_region
      %s1235 = ssub.s32 128, 32
      %1236 = vsyncadd [#allocation3], %s1235
      %s1237 = sshll.u32 [#allocation2], 4
      %s1238 = int_to_ptr.vmem [resolvable:$true] %s1237
      %1243 = dma.vmem_to_hbm [thread:$0]  %s1238, 32, %s4, [#allocation3], 32, 32, 2
    $region21: #{tpu_custom_call.1} parent=1 // pred_fallthru
      _
    // Predicated region
    $region22: #{tpu_custom_call.1} parent=1 // pred_check
      _
    $region23: #{tpu_custom_call.1} parent=1 // pred_check_branch
      %1245 = sbr.rel (0) target = $region25
    $region24: #{tpu_custom_call.1} parent=1 // pred_region
      %1246 = dma.done [#allocation3], 128
    $region25: #{tpu_custom_call.1} parent=1 // pred_fallthru
      _
    %1247 = vsyncpa [#allocation3], 1

</llo_original>
